<compile_context>
chip_gen: v5e
topology: v5e:2x2
jax: 0.10.0
libtpu: 0.0.40
codegen_flags: <defaults>
</compile_context>

<pallas_src>
import functools
import math

import jax
import jax.numpy as jnp
from jax.experimental import pallas as pl
from jax.experimental.pallas import tpu as pltpu


# ----------------------------- Pallas kernels ------------------------------ #

def _conv_relu_pool_kernel(w_ref, cols_ref, b_ref, o_ref, *, m_pooled):
    """Fused conv (as matmul) + bias + ReLU + 2x2/stride-2 max-pool.

    w:    [OC, K]            bf16   (K = C*KH*KW, torch weight.reshape order)
    cols: [K, 4*m_pooled]    bf16   (columns ordered quadrant-major: the four
                                     pool quadrants are contiguous lane slices)
    b:    [OC, 1]            f32
    o:    [OC, m_pooled]     f32    (pooled feature map, channel-first,
                                     m_pooled = N * OH/2 * OW/2)
    """
    y = jnp.dot(w_ref[...], cols_ref[...], preferred_element_type=jnp.float32)
    y = jnp.maximum(y + b_ref[...], 0.0)                      # bias + ReLU (f32)
    q0 = y[:, 0 * m_pooled:1 * m_pooled]
    q1 = y[:, 1 * m_pooled:2 * m_pooled]
    q2 = y[:, 2 * m_pooled:3 * m_pooled]
    q3 = y[:, 3 * m_pooled:4 * m_pooled]
    pooled = jnp.maximum(jnp.maximum(q0, q1), jnp.maximum(q2, q3))
    o_ref[...] = pooled.astype(o_ref.dtype)


def _mlp_kernel(x_ref, w1_ref, b1_ref, w2_ref, b2_ref, w3_ref, b3_ref, o_ref):
    """Fused fc1+ReLU -> fc2+ReLU -> fc3; intermediates never leave VMEM."""
    h = jnp.dot(x_ref[...], w1_ref[...],
                preferred_element_type=jnp.float32) + b1_ref[...]
    h = jnp.maximum(h, 0.0)
    h = jnp.dot(h.astype(w2_ref.dtype), w2_ref[...],
                preferred_element_type=jnp.float32) + b2_ref[...]
    h = jnp.maximum(h, 0.0)
    y = jnp.dot(h.astype(w3_ref.dtype), w3_ref[...],
                preferred_element_type=jnp.float32) + b3_ref[...]
    o_ref[...] = y.astype(o_ref.dtype)


def _vmem_spec():
    return pl.BlockSpec(memory_space=pltpu.MemorySpace.VMEM)


def conv_relu_pool(w_flat, b_col, cols_t, m_pooled):
    """One pallas_call per conv stage: matmul + bias + ReLU + 2x2 pool."""
    oc = w_flat.shape[0]
    kern = functools.partial(_conv_relu_pool_kernel, m_pooled=m_pooled)
    return pl.pallas_call(
        kern,
        out_shape=jax.ShapeDtypeStruct((oc, m_pooled), jnp.float32),
        in_specs=[_vmem_spec()] * 3,
        out_specs=_vmem_spec(),
    )(w_flat, cols_t, b_col)


def fused_mlp(x, w1, b1, w2, b2, w3, b3):
    m = x.shape[0]
    n_out = w3.shape[1]
    return pl.pallas_call(
        _mlp_kernel,
        out_shape=jax.ShapeDtypeStruct((m, n_out), jnp.float32),
        in_specs=[_vmem_spec()] * 7,
        out_specs=_vmem_spec(),
    )(x, w1, b1, w2, b2, w3, b3)


# ------------------------------- XLA glue ----------------------------------- #

def _im2col_pooled_cols(xc, kh, kw):
    """Channel-first x [C, N, H, W] -> bf16 cols^T [C*kh*kw, 4*N*(OH//2)*(OW//2)].

    Row (K) order is (c, kh, kw), matching torch's weight.reshape(OC, -1).
    Column order is (pool quadrant pi*2+pj, n, oh//2, ow//2), so the 2x2 pool
    of the conv output becomes a max over 4 contiguous lane slices in-kernel.
    """
    c, n, h, w = xc.shape
    oh, ow = h - kh + 1, w - kw + 1
    oh2, ow2 = oh // 2, ow // 2
    pats = jnp.stack([xc[:, :, i:i + oh, j:j + ow]
                      for i in range(kh) for j in range(kw)], axis=1)  # [C,KH*KW,N,OH,OW]
    pats = pats.reshape(c * kh * kw, n, oh2, 2, ow2, 2)                # [K,N,oh2,pi,ow2,pj]
    cols_t = pats.transpose(0, 3, 5, 1, 2, 4)                          # [K,pi,pj,N,oh2,ow2]
    cols_t = cols_t.reshape(c * kh * kw, 4 * n * oh2 * ow2)
    return cols_t.astype(jnp.bfloat16), oh2, ow2


def init_params(key, action_size):
    """Deterministic init, same shapes / fan-in uniform bounds as torch defaults."""
    def uniform(k, shape, fan_in):
        bound = 1.0 / math.sqrt(fan_in)
        return jax.random.uniform(k, shape, jnp.float32, -bound, bound)

    ks = jax.random.split(key, 10)
    return {
        "conv1_w": uniform(ks[0], (6, 4, 5, 5), 4 * 25),
        "conv1_b": uniform(ks[1], (6,), 4 * 25),
        "conv2_w": uniform(ks[2], (16, 6, 5, 5), 6 * 25),
        "conv2_b": uniform(ks[3], (16,), 6 * 25),
        "fc1_w": uniform(ks[4], (16 * 4 * 8, 120), 16 * 4 * 8),
        "fc1_b": uniform(ks[5], (120,), 16 * 4 * 8),
        "fc2_w": uniform(ks[6], (120, 84), 120),
        "fc2_b": uniform(ks[7], (84,), 120),
        "fc3_w": uniform(ks[8], (84, action_size), 84),
        "fc3_b": uniform(ks[9], (action_size,), 84),
    }


def prepare_params(params):
    """One-time layout/dtype prep: pre-flattened bf16 conv/fc weights,
    column-vector conv biases, row-vector FC biases (all done once, not per step)."""
    bf = jnp.bfloat16
    return {
        "conv1_w": params["conv1_w"].reshape(6, -1).astype(bf),        # [6, 100]
        "conv1_b": params["conv1_b"].reshape(6, 1).astype(jnp.float32),
        "conv2_w": params["conv2_w"].reshape(16, -1).astype(bf),       # [16, 150]
        "conv2_b": params["conv2_b"].reshape(16, 1).astype(jnp.float32),
        "fc1_w": params["fc1_w"].astype(bf), "fc1_b": params["fc1_b"].reshape(1, -1),
        "fc2_w": params["fc2_w"].astype(bf), "fc2_b": params["fc2_b"].reshape(1, -1),
        "fc3_w": params["fc3_w"].astype(bf), "fc3_b": params["fc3_b"].reshape(1, -1),
    }


@jax.jit
def convnet_forward(prep, x):
    n = x.shape[0]

    # conv1 + ReLU + 2x2 pool: [N,4,28,44] -> pooled channel-first [6, N*12*20]
    xc = jnp.transpose(x, (1, 0, 2, 3))                               # [C, N, H, W]
    cols1, oh1, ow1 = _im2col_pooled_cols(xc, 5, 5)                   # [100, 4*N*12*20]
    p1 = conv_relu_pool(prep["conv1_w"], prep["conv1_b"], cols1, n * oh1 * ow1)

    # conv2 + ReLU + 2x2 pool: [6, N*12*20] -> pooled [16, N*4*8]
    xc2 = p1.reshape(6, n, oh1, ow1)                                  # already channel-first
    cols2, oh2, ow2 = _im2col_pooled_cols(xc2, 5, 5)                  # [150, 4*N*4*8]
    p2 = conv_relu_pool(prep["conv2_w"], prep["conv2_b"], cols2, n * oh2 * ow2)

    # flatten in torch's (C, H, W) order, then fused 3-layer MLP
    xf = p2.reshape(16, n, oh2 * ow2).transpose(1, 0, 2).reshape(n, 16 * oh2 * ow2)
    return fused_mlp(xf.astype(jnp.bfloat16),
                     prep["fc1_w"], prep["fc1_b"],
                     prep["fc2_w"], prep["fc2_b"],
                     prep["fc3_w"], prep["fc3_b"])


def convnet_reference(params, x):
    """Pure-jnp reference (same bf16-operand / f32-accumulate arithmetic)."""
    def conv_relu(x, w, b):
        oc, _, kh, kw = w.shape
        n, c, h, ww = x.shape
        oh, ow = h - kh + 1, ww - kw + 1
        cols = jnp.stack([x[:, :, i:i + oh, j:j + ow]
                          for i in range(kh) for j in range(kw)], axis=2)
        cols = cols.reshape(n, c * kh * kw, oh, ow).transpose(0, 2, 3, 1)
        cols = cols.reshape(n * oh * ow, c * kh * kw)
        y = jnp.dot(cols.astype(jnp.bfloat16),
                    w.reshape(oc, -1).T.astype(jnp.bfloat16),
                    preferred_element_type=jnp.float32) + b
        y = jnp.maximum(y, 0.0)
        return y.reshape(n, oh, ow, oc).transpose(0, 3, 1, 2)

    def pool(x):
        n, c, h, w = x.shape
        return x.reshape(n, c, h // 2, 2, w // 2, 2).max(axis=(3, 5))

    def fc(x, w, b, relu):
        y = jnp.dot(x.astype(jnp.bfloat16), w.astype(jnp.bfloat16),
                    preferred_element_type=jnp.float32) + b
        return jnp.maximum(y, 0.0) if relu else y

    y = pool(conv_relu(x, params["conv1_w"], params["conv1_b"]))
    y = pool(conv_relu(y, params["conv2_w"], params["conv2_b"]))
    y = y.reshape(-1, 16 * 4 * 8)
    y = fc(y, params["fc1_w"], params["fc1_b"], True)
    y = fc(y, params["fc2_w"], params["fc2_b"], True)
    return fc(y, params["fc3_w"], params["fc3_b"], False)


if __name__ == "__main__":
    action_size = 10
    key = jax.random.PRNGKey(0)
    pkey, xkey = jax.random.split(key)
    params = init_params(pkey, action_size)
    prep = prepare_params(params)

    # H=28, W=44 so that after (conv5 -> pool2) x2 the map is 16 x 4 x 8 = 512,
    # matching fc1's input size exactly as the PyTorch module requires.
    x = jax.random.normal(xkey, (2, 4, 28, 44), jnp.float32)

    out = jax.block_until_ready(convnet_forward(prep, x))
    assert out.shape == (2, action_size)

    ref = convnet_reference(params, x)
    err = float(jnp.max(jnp.abs(out - ref)))
    assert jnp.allclose(out, ref, atol=2e-2, rtol=2e-2), err

    print("KERNEL_OK")
</pallas_src>

<mosaic_0001>
module attributes {stable_mosaic.version = 11 : i64} {
  func.func @_conv_relu_pool_kernel(%arg0: memref<6x100xbf16, #tpu.memory_space<vmem>>, %arg1: memref<100x1920xbf16, #tpu.memory_space<vmem>>, %arg2: memref<6x1xf32, #tpu.memory_space<vmem>>, %arg3: memref<6x480xf32, #tpu.memory_space<vmem>>) attributes {dimension_semantics = [], scalar_prefetch = 0 : i64, scratch_operands = 0 : i64, tpu.core_type = #tpu.core_type<tc>} {
    %c0 = arith.constant 0 : index
    %c0_0 = arith.constant 0 : index
    %0 = vector.load %arg0[%c0, %c0_0] : memref<6x100xbf16, #tpu.memory_space<vmem>>, vector<6x100xbf16>
    %c0_1 = arith.constant 0 : index
    %c0_2 = arith.constant 0 : index
    %1 = vector.load %arg1[%c0_1, %c0_2] : memref<100x1920xbf16, #tpu.memory_space<vmem>>, vector<100x1920xbf16>
    %cst = arith.constant dense<0.000000e+00> : vector<6x1920xf32>
    %2 = tpu.matmul %0, %1, %cst {dimension_numbers = #tpu.dot_dimension_numbers<[1], [0], [0], [1], [0, 0, 1, 1], [], []>} : vector<6x100xbf16>, vector<100x1920xbf16>, vector<6x1920xf32> -> vector<6x1920xf32>
    %c0_3 = arith.constant 0 : index
    %c0_4 = arith.constant 0 : index
    %3 = vector.load %arg2[%c0_3, %c0_4] : memref<6x1xf32, #tpu.memory_space<vmem>>, vector<6x1xf32>
    %4 = vector.broadcast %3 : vector<6x1xf32> to vector<6x1920xf32>
    %5 = arith.addf %2, %4 : vector<6x1920xf32>
    %cst_5 = arith.constant 0.000000e+00 : f32
    %6 = vector.broadcast %cst_5 : f32 to vector<6x1920xf32>
    %7 = arith.maximumf %5, %6 : vector<6x1920xf32>
    %8 = vector.extract_strided_slice %7 {offsets = [0, 0], sizes = [6, 480], strides = [1, 1]} : vector<6x1920xf32> to vector<6x480xf32>
    %9 = vector.extract_strided_slice %7 {offsets = [0, 480], sizes = [6, 480], strides = [1, 1]} : vector<6x1920xf32> to vector<6x480xf32>
    %10 = vector.extract_strided_slice %7 {offsets = [0, 960], sizes = [6, 480], strides = [1, 1]} : vector<6x1920xf32> to vector<6x480xf32>
    %11 = vector.extract_strided_slice %7 {offsets = [0, 1440], sizes = [6, 480], strides = [1, 1]} : vector<6x1920xf32> to vector<6x480xf32>
    %12 = arith.maximumf %8, %9 : vector<6x480xf32>
    %13 = arith.maximumf %10, %11 : vector<6x480xf32>
    %14 = arith.maximumf %12, %13 : vector<6x480xf32>
    %c0_6 = arith.constant 0 : index
    %c0_7 = arith.constant 0 : index
    %15 = vector.load %arg3[%c0_6, %c0_7] : memref<6x480xf32, #tpu.memory_space<vmem>>, vector<6x480xf32>
    tpu.vector_store %arg3[%c0_6, %c0_7], %14 {strides = array<i32>} : memref<6x480xf32, #tpu.memory_space<vmem>>, vector<6x480xf32>,
    return
  }
}

module attributes {stable_mosaic.version = 11 : i64} {
  func.func @_conv_relu_pool_kernel(%arg0: memref<16x150xbf16, #tpu.memory_space<vmem>>, %arg1: memref<150x256xbf16, #tpu.memory_space<vmem>>, %arg2: memref<16x1xf32, #tpu.memory_space<vmem>>, %arg3: memref<16x64xf32, #tpu.memory_space<vmem>>) attributes {dimension_semantics = [], scalar_prefetch = 0 : i64, scratch_operands = 0 : i64, tpu.core_type = #tpu.core_type<tc>} {
    %c0 = arith.constant 0 : index
    %c0_0 = arith.constant 0 : index
    %0 = vector.load %arg0[%c0, %c0_0] : memref<16x150xbf16, #tpu.memory_space<vmem>>, vector<16x150xbf16>
    %c0_1 = arith.constant 0 : index
    %c0_2 = arith.constant 0 : index
    %1 = vector.load %arg1[%c0_1, %c0_2] : memref<150x256xbf16, #tpu.memory_space<vmem>>, vector<150x256xbf16>
    %cst = arith.constant dense<0.000000e+00> : vector<16x256xf32>
    %2 = tpu.matmul %0, %1, %cst {dimension_numbers = #tpu.dot_dimension_numbers<[1], [0], [0], [1], [0, 0, 1, 1], [], []>} : vector<16x150xbf16>, vector<150x256xbf16>, vector<16x256xf32> -> vector<16x256xf32>
    %c0_3 = arith.constant 0 : index
    %c0_4 = arith.constant 0 : index
    %3 = vector.load %arg2[%c0_3, %c0_4] : memref<16x1xf32, #tpu.memory_space<vmem>>, vector<16x1xf32>
    %4 = vector.broadcast %3 : vector<16x1xf32> to vector<16x256xf32>
    %5 = arith.addf %2, %4 : vector<16x256xf32>
    %cst_5 = arith.constant 0.000000e+00 : f32
    %6 = vector.broadcast %cst_5 : f32 to vector<16x256xf32>
    %7 = arith.maximumf %5, %6 : vector<16x256xf32>
    %8 = vector.extract_strided_slice %7 {offsets = [0, 0], sizes = [16, 64], strides = [1, 1]} : vector<16x256xf32> to vector<16x64xf32>
    %9 = vector.extract_strided_slice %7 {offsets = [0, 64], sizes = [16, 64], strides = [1, 1]} : vector<16x256xf32> to vector<16x64xf32>
    %10 = vector.extract_strided_slice %7 {offsets = [0, 128], sizes = [16, 64], strides = [1, 1]} : vector<16x256xf32> to vector<16x64xf32>
    %11 = vector.extract_strided_slice %7 {offsets = [0, 192], sizes = [16, 64], strides = [1, 1]} : vector<16x256xf32> to vector<16x64xf32>
    %12 = arith.maximumf %8, %9 : vector<16x64xf32>
    %13 = arith.maximumf %10, %11 : vector<16x64xf32>
    %14 = arith.maximumf %12, %13 : vector<16x64xf32>
    %c0_6 = arith.constant 0 : index
    %c0_7 = arith.constant 0 : index
    %15 = vector.load %arg3[%c0_6, %c0_7] : memref<16x64xf32, #tpu.memory_space<vmem>>, vector<16x64xf32>
    tpu.vector_store %arg3[%c0_6, %c0_7], %14 {strides = array<i32>} : memref<16x64xf32, #tpu.memory_space<vmem>>, vector<16x64xf32>,
    return
  }
}

module attributes {stable_mosaic.version = 11 : i64} {
  func.func @_mlp_kernel(%arg0: memref<2x512xbf16, #tpu.memory_space<vmem>>, %arg1: memref<512x120xbf16, #tpu.memory_space<vmem>>, %arg2: memref<1x120xf32, #tpu.memory_space<vmem>>, %arg3: memref<120x84xbf16, #tpu.memory_space<vmem>>, %arg4: memref<1x84xf32, #tpu.memory_space<vmem>>, %arg5: memref<84x10xbf16, #tpu.memory_space<vmem>>, %arg6: memref<1x10xf32, #tpu.memory_space<vmem>>, %arg7: memref<2x10xf32, #tpu.memory_space<vmem>>) attributes {dimension_semantics = [], scalar_prefetch = 0 : i64, scratch_operands = 0 : i64, tpu.core_type = #tpu.core_type<tc>} {
    %c0 = arith.constant 0 : index
    %c0_0 = arith.constant 0 : index
    %0 = vector.load %arg0[%c0, %c0_0] : memref<2x512xbf16, #tpu.memory_space<vmem>>, vector<2x512xbf16>
    %c0_1 = arith.constant 0 : index
    %c0_2 = arith.constant 0 : index
    %1 = vector.load %arg1[%c0_1, %c0_2] : memref<512x120xbf16, #tpu.memory_space<vmem>>, vector<512x120xbf16>
    %cst = arith.constant dense<0.000000e+00> : vector<2x120xf32>
    %2 = tpu.matmul %0, %1, %cst {dimension_numbers = #tpu.dot_dimension_numbers<[1], [0], [0], [1], [0, 0, 1, 1], [], []>} : vector<2x512xbf16>, vector<512x120xbf16>, vector<2x120xf32> -> vector<2x120xf32>
    %c0_3 = arith.constant 0 : index
    %c0_4 = arith.constant 0 : index
    %3 = vector.load %arg2[%c0_3, %c0_4] : memref<1x120xf32, #tpu.memory_space<vmem>>, vector<1x120xf32>
    %4 = vector.broadcast %3 : vector<1x120xf32> to vector<2x120xf32>
    %5 = arith.addf %2, %4 : vector<2x120xf32>
    %cst_5 = arith.constant 0.000000e+00 : f32
    %6 = vector.broadcast %cst_5 : f32 to vector<2x120xf32>
    %7 = arith.maximumf %5, %6 : vector<2x120xf32>
    %8 = arith.truncf %7 : vector<2x120xf32> to vector<2x120xbf16>
    %c0_6 = arith.constant 0 : index
    %c0_7 = arith.constant 0 : index
    %9 = vector.load %arg3[%c0_6, %c0_7] : memref<120x84xbf16, #tpu.memory_space<vmem>>, vector<120x84xbf16>
    %cst_8 = arith.constant dense<0.000000e+00> : vector<2x84xf32>
    %10 = tpu.matmul %8, %9, %cst_8 {dimension_numbers = #tpu.dot_dimension_numbers<[1], [0], [0], [1], [0, 0, 1, 1], [], []>} : vector<2x120xbf16>, vector<120x84xbf16>, vector<2x84xf32> -> vector<2x84xf32>
    %c0_9 = arith.constant 0 : index
    %c0_10 = arith.constant 0 : index
    %11 = vector.load %arg4[%c0_9, %c0_10] : memref<1x84xf32, #tpu.memory_space<vmem>>, vector<1x84xf32>
    %12 = vector.broadcast %11 : vector<1x84xf32> to vector<2x84xf32>
    %13 = arith.addf %10, %12 : vector<2x84xf32>
    %cst_11 = arith.constant 0.000000e+00 : f32
    %14 = vector.broadcast %cst_11 : f32 to vector<2x84xf32>
    %15 = arith.maximumf %13, %14 : vector<2x84xf32>
    %16 = arith.truncf %15 : vector<2x84xf32> to vector<2x84xbf16>
    %c0_12 = arith.constant 0 : index
    %c0_13 = arith.constant 0 : index
    %17 = vector.load %arg5[%c0_12, %c0_13] : memref<84x10xbf16, #tpu.memory_space<vmem>>, vector<84x10xbf16>
    %cst_14 = arith.constant dense<0.000000e+00> : vector<2x10xf32>
    %18 = tpu.matmul %16, %17, %cst_14 {dimension_numbers = #tpu.dot_dimension_numbers<[1], [0], [0], [1], [0, 0, 1, 1], [], []>} : vector<2x84xbf16>, vector<84x10xbf16>, vector<2x10xf32> -> vector<2x10xf32>
    %c0_15 = arith.constant 0 : index
    %c0_16 = arith.constant 0 : index
    %19 = vector.load %arg6[%c0_15, %c0_16] : memref<1x10xf32, #tpu.memory_space<vmem>>, vector<1x10xf32>
    %20 = vector.broadcast %19 : vector<1x10xf32> to vector<2x10xf32>
    %21 = arith.addf %18, %20 : vector<2x10xf32>
    %c0_17 = arith.constant 0 : index
    %c0_18 = arith.constant 0 : index
    %22 = vector.load %arg7[%c0_17, %c0_18] : memref<2x10xf32, #tpu.memory_space<vmem>>, vector<2x10xf32>
    tpu.vector_store %arg7[%c0_17, %c0_18], %21 {strides = array<i32>} : memref<2x10xf32, #tpu.memory_space<vmem>>, vector<2x10xf32>,
    return
  }
}

</mosaic_0001>

<llo_original>
// kernel: convnet_forward.3
$region0: #{convnet_forward.3}
  #allocation0 [shape = 'u32[]', space=smem, size = 0x4, offset = 0x4, fixed_abs, tag = 'smem constant byte address 0x4 - core index']
  #allocation1 [shape = 'u32[72,128]{1,0:T(1,128)}', space=vmem, size = 0x9000, scoped, tag = 'internal scratch']
  %s0 = inlined_call_operand.vmem [shape: bf16[6,100], index: 0, kind: input, shape index: {}]
  %s1 = inlined_call_operand.vmem [shape: bf16[100,1920], index: 1, kind: input, shape index: {}]
  %s2 = inlined_call_operand.vmem [shape: f32[6,1], index: 2, kind: input, shape index: {}]
  %s3 = inlined_call_operand.vmem [shape: f32[6,480], index: 3, kind: output, shape index: {}]
  %s4 = sld [smem:[#allocation0]]
  $region22: #{convnet_forward.3} parent=0
    _
  %s6 = ssub.s32 1, %s4
  %s7 = scalar_select 0, %s6, %s4
  // Predicated region
  $region2: #{convnet_forward.3} parent=0 // pred_check
    _
  $region3: #{convnet_forward.3} parent=0 // pred_check_branch
    %9 = sbr.rel (0) target = $region5
  $region4: #{convnet_forward.3} parent=0 // pred_region
    _
  $region5: #{convnet_forward.3} parent=0 // pred_fallthru
    _
  // Predicated region
  $region6: #{convnet_forward.3} parent=0 // pred_check
    _
  $region7: #{convnet_forward.3} parent=0 // pred_check_branch
    %11 = sbr.rel (0) target = $region9
  $region8: #{convnet_forward.3} parent=0 // pred_region
    _
  $region9: #{convnet_forward.3} parent=0 // pred_fallthru
    _
  // Predicated region
  $region10: #{convnet_forward.3} parent=0 // pred_check
    _
  $region11: #{convnet_forward.3} parent=0 // pred_check_branch
    %13 = sbr.rel (0) target = $region13
  $region12: #{convnet_forward.3} parent=0 // pred_region
    _
  $region13: #{convnet_forward.3} parent=0 // pred_fallthru
    _
  %v15 = vld [vmem:[%s0] sm:$0x7]
  %v16 = vld [vmem:[%s1] sm:$0xff]
  %v17 = vld [vmem:[%s1 + $0x8] sm:$0xff]
  %v18 = vld [vmem:[%s1 + $0x10] sm:$0xff]
  %v19 = vld [vmem:[%s1 + $0x18] sm:$0xff]
  %v20 = vld [vmem:[%s1 + $0x20] sm:$0xff]
  %v21 = vld [vmem:[%s1 + $0x28] sm:$0xff]
  %v22 = vld [vmem:[%s1 + $0x30] sm:$0xff]
  %v23 = vld [vmem:[%s1 + $0x38] sm:$0xf]
  %v24 = vld [vmem:[%s1 + $0x3c] sm:$0xff]
  %v25 = vld [vmem:[%s1 + $0x44] sm:$0xff]
  %v26 = vld [vmem:[%s1 + $0x4c] sm:$0xff]
  %v27 = vld [vmem:[%s1 + $0x54] sm:$0xff]
  %v28 = vld [vmem:[%s1 + $0x5c] sm:$0xff]
  %v29 = vld [vmem:[%s1 + $0x64] sm:$0xff]
  %v30 = vld [vmem:[%s1 + $0x6c] sm:$0xff]
  %v31 = vld [vmem:[%s1 + $0x74] sm:$0xf]
  %v32 = vld [vmem:[%s1 + $0x78] sm:$0xff]
  %v33 = vld [vmem:[%s1 + $0x80] sm:$0xff]
  %v34 = vld [vmem:[%s1 + $0x88] sm:$0xff]
  %v35 = vld [vmem:[%s1 + $0x90] sm:$0xff]
  %v36 = vld [vmem:[%s1 + $0x98] sm:$0xff]
  %v37 = vld [vmem:[%s1 + $0xa0] sm:$0xff]
  %v38 = vld [vmem:[%s1 + $0xa8] sm:$0xff]
  %v39 = vld [vmem:[%s1 + $0xb0] sm:$0xf]
  %v40 = vld [vmem:[%s1 + $0xb4] sm:$0xff]
  %v41 = vld [vmem:[%s1 + $0xbc] sm:$0xff]
  %v42 = vld [vmem:[%s1 + $0xc4] sm:$0xff]
  %v43 = vld [vmem:[%s1 + $0xcc] sm:$0xff]
  %v44 = vld [vmem:[%s1 + $0xd4] sm:$0xff]
  %v45 = vld [vmem:[%s1 + $0xdc] sm:$0xff]
  %v46 = vld [vmem:[%s1 + $0xe4] sm:$0xff]
  %v47 = vld [vmem:[%s1 + $0xec] sm:$0xf]
  %v48 = vld [vmem:[%s1 + $0xf0] sm:$0xff]
  %v49 = vld [vmem:[%s1 + $0xf8] sm:$0xff]
  %v50 = vld [vmem:[%s1 + $0x100] sm:$0xff]
  %v51 = vld [vmem:[%s1 + $0x108] sm:$0xff]
  %v52 = vld [vmem:[%s1 + $0x110] sm:$0xff]
  %v53 = vld [vmem:[%s1 + $0x118] sm:$0xff]
  %v54 = vld [vmem:[%s1 + $0x120] sm:$0xff]
  %v55 = vld [vmem:[%s1 + $0x128] sm:$0xf]
  %v56 = vld [vmem:[%s1 + $0x12c] sm:$0xff]
  %v57 = vld [vmem:[%s1 + $0x134] sm:$0xff]
  %v58 = vld [vmem:[%s1 + $0x13c] sm:$0xff]
  %v59 = vld [vmem:[%s1 + $0x144] sm:$0xff]
  %v60 = vld [vmem:[%s1 + $0x14c] sm:$0xff]
  %v61 = vld [vmem:[%s1 + $0x154] sm:$0xff]
  %v62 = vld [vmem:[%s1 + $0x15c] sm:$0xff]
  %v63 = vld [vmem:[%s1 + $0x164] sm:$0xf]
  %v64 = vld [vmem:[%s1 + $0x168] sm:$0xff]
  %v65 = vld [vmem:[%s1 + $0x170] sm:$0xff]
  %v66 = vld [vmem:[%s1 + $0x178] sm:$0xff]
  %v67 = vld [vmem:[%s1 + $0x180] sm:$0xff]
  %v68 = vld [vmem:[%s1 + $0x188] sm:$0xff]
  %v69 = vld [vmem:[%s1 + $0x190] sm:$0xff]
  %v70 = vld [vmem:[%s1 + $0x198] sm:$0xff]
  %v71 = vld [vmem:[%s1 + $0x1a0] sm:$0xf]
  %v72 = vld [vmem:[%s1 + $0x1a4] sm:$0xff]
  %v73 = vld [vmem:[%s1 + $0x1ac] sm:$0xff]
  %v74 = vld [vmem:[%s1 + $0x1b4] sm:$0xff]
  %v75 = vld [vmem:[%s1 + $0x1bc] sm:$0xff]
  %v76 = vld [vmem:[%s1 + $0x1c4] sm:$0xff]
  %v77 = vld [vmem:[%s1 + $0x1cc] sm:$0xff]
  %v78 = vld [vmem:[%s1 + $0x1d4] sm:$0xff]
  %v79 = vld [vmem:[%s1 + $0x1dc] sm:$0xf]
  %v80 = vld [vmem:[%s1 + $0x1e0] sm:$0xff]
  %v81 = vld [vmem:[%s1 + $0x1e8] sm:$0xff]
  %v82 = vld [vmem:[%s1 + $0x1f0] sm:$0xff]
  %v83 = vld [vmem:[%s1 + $0x1f8] sm:$0xff]
  %v84 = vld [vmem:[%s1 + $0x200] sm:$0xff]
  %v85 = vld [vmem:[%s1 + $0x208] sm:$0xff]
  %v86 = vld [vmem:[%s1 + $0x210] sm:$0xff]
  %v87 = vld [vmem:[%s1 + $0x218] sm:$0xf]
  %v88 = vld [vmem:[%s1 + $0x21c] sm:$0xff]
  %v89 = vld [vmem:[%s1 + $0x224] sm:$0xff]
  %v90 = vld [vmem:[%s1 + $0x22c] sm:$0xff]
  %v91 = vld [vmem:[%s1 + $0x234] sm:$0xff]
  %v92 = vld [vmem:[%s1 + $0x23c] sm:$0xff]
  %v93 = vld [vmem:[%s1 + $0x244] sm:$0xff]
  %v94 = vld [vmem:[%s1 + $0x24c] sm:$0xff]
  %v95 = vld [vmem:[%s1 + $0x254] sm:$0xf]
  %v96 = vld [vmem:[%s1 + $0x258] sm:$0xff]
  %v97 = vld [vmem:[%s1 + $0x260] sm:$0xff]
  %v98 = vld [vmem:[%s1 + $0x268] sm:$0xff]
  %v99 = vld [vmem:[%s1 + $0x270] sm:$0xff]
  %v100 = vld [vmem:[%s1 + $0x278] sm:$0xff]
  %v101 = vld [vmem:[%s1 + $0x280] sm:$0xff]
  %v102 = vld [vmem:[%s1 + $0x288] sm:$0xff]
  %v103 = vld [vmem:[%s1 + $0x290] sm:$0xf]
  %v104 = vld [vmem:[%s1 + $0x294] sm:$0xff]
  %v105 = vld [vmem:[%s1 + $0x29c] sm:$0xff]
  %v106 = vld [vmem:[%s1 + $0x2a4] sm:$0xff]
  %v107 = vld [vmem:[%s1 + $0x2ac] sm:$0xff]
  %v108 = vld [vmem:[%s1 + $0x2b4] sm:$0xff]
  %v109 = vld [vmem:[%s1 + $0x2bc] sm:$0xff]
  %v110 = vld [vmem:[%s1 + $0x2c4] sm:$0xff]
  %v111 = vld [vmem:[%s1 + $0x2cc] sm:$0xf]
  %v112 = vld [vmem:[%s1 + $0x2d0] sm:$0x33]
  %v113 = vld [vmem:[%s1 + $0x2d8] sm:$0x33]
  %v114 = vld [vmem:[%s1 + $0x2e0] sm:$0x33]
  %v115 = vld [vmem:[%s1 + $0x2e8] sm:$0x33]
  %v116 = vld [vmem:[%s1 + $0x2f0] sm:$0x33]
  %v117 = vld [vmem:[%s1 + $0x2f8] sm:$0x33]
  %v118 = vld [vmem:[%s1 + $0x300] sm:$0x33]
  %v119 = vld [vmem:[%s1 + $0x308] sm:$0x3]
  %v120 = vld [vmem:[%s2] sm:$0x3f]
  %122 = vset.pattern.permute.xlu0 0
  %123 = vperm.xlu0 %122, %v120
  %v124 = vpop.permute.xlu0 %123
  %v230 = vunpack.c.l.b16 %v16
  %v231 = vunpack.c.h.b16 %v16
  %v232 = vunpack.c.l.b16 %v17
  %v233 = vunpack.c.h.b16 %v17
  %v234 = vunpack.c.l.b16 %v18
  %v235 = vunpack.c.h.b16 %v18
  %v236 = vunpack.c.l.b16 %v19
  %v237 = vunpack.c.h.b16 %v19
  %v238 = vunpack.c.l.b16 %v20
  %v239 = vunpack.c.h.b16 %v20
  %v240 = vunpack.c.l.b16 %v21
  %v241 = vunpack.c.h.b16 %v21
  %v242 = vunpack.c.l.b16 %v22
  %v243 = vunpack.c.h.b16 %v22
  %v244 = vunpack.c.l.b16 %v23
  %v245 = vunpack.c.l.b16 %v24
  %v246 = vunpack.c.h.b16 %v24
  %v247 = vunpack.c.l.b16 %v25
  %v248 = vunpack.c.h.b16 %v25
  %v249 = vunpack.c.l.b16 %v26
  %v250 = vunpack.c.h.b16 %v26
  %v251 = vunpack.c.l.b16 %v27
  %v252 = vunpack.c.h.b16 %v27
  %v253 = vunpack.c.l.b16 %v28
  %v254 = vunpack.c.h.b16 %v28
  %v255 = vunpack.c.l.b16 %v29
  %v256 = vunpack.c.h.b16 %v29
  %v257 = vunpack.c.l.b16 %v30
  %v258 = vunpack.c.h.b16 %v30
  %v259 = vunpack.c.l.b16 %v31
  %v260 = vunpack.c.l.b16 %v32
  %v261 = vunpack.c.h.b16 %v32
  %v262 = vunpack.c.l.b16 %v33
  %v263 = vunpack.c.h.b16 %v33
  %v264 = vunpack.c.l.b16 %v34
  %v265 = vunpack.c.h.b16 %v34
  %v266 = vunpack.c.l.b16 %v35
  %v267 = vunpack.c.h.b16 %v35
  %v268 = vunpack.c.l.b16 %v36
  %v269 = vunpack.c.h.b16 %v36
  %v270 = vunpack.c.l.b16 %v37
  %v271 = vunpack.c.h.b16 %v37
  %v272 = vunpack.c.l.b16 %v38
  %v273 = vunpack.c.h.b16 %v38
  %v274 = vunpack.c.l.b16 %v39
  %v275 = vunpack.c.l.b16 %v40
  %v276 = vunpack.c.h.b16 %v40
  %v277 = vunpack.c.l.b16 %v41
  %v278 = vunpack.c.h.b16 %v41
  %v279 = vunpack.c.l.b16 %v42
  %v280 = vunpack.c.h.b16 %v42
  %v281 = vunpack.c.l.b16 %v43
  %v282 = vunpack.c.h.b16 %v43
  %v283 = vunpack.c.l.b16 %v44
  %v284 = vunpack.c.h.b16 %v44
  %v285 = vunpack.c.l.b16 %v45
  %v286 = vunpack.c.h.b16 %v45
  %v287 = vunpack.c.l.b16 %v46
  %v288 = vunpack.c.h.b16 %v46
  %v289 = vunpack.c.l.b16 %v47
  %v290 = vunpack.c.l.b16 %v48
  %v291 = vunpack.c.h.b16 %v48
  %v292 = vunpack.c.l.b16 %v49
  %v293 = vunpack.c.h.b16 %v49
  %v294 = vunpack.c.l.b16 %v50
  %v295 = vunpack.c.h.b16 %v50
  %v296 = vunpack.c.l.b16 %v51
  %v297 = vunpack.c.h.b16 %v51
  %v298 = vunpack.c.l.b16 %v52
  %v299 = vunpack.c.h.b16 %v52
  %v300 = vunpack.c.l.b16 %v53
  %v301 = vunpack.c.h.b16 %v53
  %v302 = vunpack.c.l.b16 %v54
  %v303 = vunpack.c.h.b16 %v54
  %v304 = vunpack.c.l.b16 %v55
  %v305 = vunpack.c.l.b16 %v56
  %v306 = vunpack.c.h.b16 %v56
  %v307 = vunpack.c.l.b16 %v57
  %v308 = vunpack.c.h.b16 %v57
  %v309 = vunpack.c.l.b16 %v58
  %v310 = vunpack.c.h.b16 %v58
  %v311 = vunpack.c.l.b16 %v59
  %v312 = vunpack.c.h.b16 %v59
  %v313 = vunpack.c.l.b16 %v60
  %v314 = vunpack.c.h.b16 %v60
  %v315 = vunpack.c.l.b16 %v61
  %v316 = vunpack.c.h.b16 %v61
  %v317 = vunpack.c.l.b16 %v62
  %v318 = vunpack.c.h.b16 %v62
  %v319 = vunpack.c.l.b16 %v63
  %v320 = vunpack.c.l.b16 %v64
  %v321 = vunpack.c.h.b16 %v64
  %v322 = vunpack.c.l.b16 %v65
  %v323 = vunpack.c.h.b16 %v65
  %v324 = vunpack.c.l.b16 %v66
  %v325 = vunpack.c.h.b16 %v66
  %v326 = vunpack.c.l.b16 %v67
  %v327 = vunpack.c.h.b16 %v67
  %v328 = vunpack.c.l.b16 %v68
  %v329 = vunpack.c.h.b16 %v68
  %v330 = vunpack.c.l.b16 %v69
  %v331 = vunpack.c.h.b16 %v69
  %v332 = vunpack.c.l.b16 %v70
  %v333 = vunpack.c.h.b16 %v70
  %v334 = vunpack.c.l.b16 %v71
  %v335 = vunpack.c.l.b16 %v72
  %v336 = vunpack.c.h.b16 %v72
  %v337 = vunpack.c.l.b16 %v73
  %v338 = vunpack.c.h.b16 %v73
  %v339 = vunpack.c.l.b16 %v74
  %v340 = vunpack.c.h.b16 %v74
  %v341 = vunpack.c.l.b16 %v75
  %v342 = vunpack.c.h.b16 %v75
  %v343 = vunpack.c.l.b16 %v76
  %v344 = vunpack.c.h.b16 %v76
  %v345 = vunpack.c.l.b16 %v77
  %v346 = vunpack.c.h.b16 %v77
  %v347 = vunpack.c.l.b16 %v78
  %v348 = vunpack.c.h.b16 %v78
  %v349 = vunpack.c.l.b16 %v79
  %v350 = vunpack.c.l.b16 %v80
  %v351 = vunpack.c.h.b16 %v80
  %v352 = vunpack.c.l.b16 %v81
  %v353 = vunpack.c.h.b16 %v81
  %v354 = vunpack.c.l.b16 %v82
  %v355 = vunpack.c.h.b16 %v82
  %v356 = vunpack.c.l.b16 %v83
  %v357 = vunpack.c.h.b16 %v83
  %v358 = vunpack.c.l.b16 %v84
  %v359 = vunpack.c.h.b16 %v84
  %v360 = vunpack.c.l.b16 %v85
  %v361 = vunpack.c.h.b16 %v85
  %v362 = vunpack.c.l.b16 %v86
  %v363 = vunpack.c.h.b16 %v86
  %v364 = vunpack.c.l.b16 %v87
  %v365 = vunpack.c.l.b16 %v88
  %v366 = vunpack.c.h.b16 %v88
  %v367 = vunpack.c.l.b16 %v89
  %v368 = vunpack.c.h.b16 %v89
  %v369 = vunpack.c.l.b16 %v90
  %v370 = vunpack.c.h.b16 %v90
  %v371 = vunpack.c.l.b16 %v91
  %v372 = vunpack.c.h.b16 %v91
  %v373 = vunpack.c.l.b16 %v92
  %v374 = vunpack.c.h.b16 %v92
  %v375 = vunpack.c.l.b16 %v93
  %v376 = vunpack.c.h.b16 %v93
  %v377 = vunpack.c.l.b16 %v94
  %v378 = vunpack.c.h.b16 %v94
  %v379 = vunpack.c.l.b16 %v95
  %v380 = vunpack.c.l.b16 %v96
  %v381 = vunpack.c.h.b16 %v96
  %v382 = vunpack.c.l.b16 %v97
  %v383 = vunpack.c.h.b16 %v97
  %v384 = vunpack.c.l.b16 %v98
  %v385 = vunpack.c.h.b16 %v98
  %v386 = vunpack.c.l.b16 %v99
  %v387 = vunpack.c.h.b16 %v99
  %v388 = vunpack.c.l.b16 %v100
  %v389 = vunpack.c.h.b16 %v100
  %v390 = vunpack.c.l.b16 %v101
  %v391 = vunpack.c.h.b16 %v101
  %v392 = vunpack.c.l.b16 %v102
  %v393 = vunpack.c.h.b16 %v102
  %v394 = vunpack.c.l.b16 %v103
  %v395 = vunpack.c.l.b16 %v104
  %v396 = vunpack.c.h.b16 %v104
  %v397 = vunpack.c.l.b16 %v105
  %v398 = vunpack.c.h.b16 %v105
  %v399 = vunpack.c.l.b16 %v106
  %v400 = vunpack.c.h.b16 %v106
  %v401 = vunpack.c.l.b16 %v107
  %v402 = vunpack.c.h.b16 %v107
  %v403 = vunpack.c.l.b16 %v108
  %v404 = vunpack.c.h.b16 %v108
  %v405 = vunpack.c.l.b16 %v109
  %v406 = vunpack.c.h.b16 %v109
  %v407 = vunpack.c.l.b16 %v110
  %v408 = vunpack.c.h.b16 %v110
  %v409 = vunpack.c.l.b16 %v111
  %v410 = vunpack.c.l.b16 %v112
  %v411 = vunpack.c.h.b16 %v112
  %v412 = vunpack.c.l.b16 %v113
  %v413 = vunpack.c.h.b16 %v113
  %v414 = vunpack.c.l.b16 %v114
  %v415 = vunpack.c.h.b16 %v114
  %v416 = vunpack.c.l.b16 %v115
  %v417 = vunpack.c.h.b16 %v115
  %v418 = vunpack.c.l.b16 %v116
  %v419 = vunpack.c.h.b16 %v116
  %v420 = vunpack.c.l.b16 %v117
  %v421 = vunpack.c.h.b16 %v117
  %v422 = vunpack.c.l.b16 %v118
  %v423 = vunpack.c.h.b16 %v118
  %v424 = vunpack.c.l.b16 %v119
  %v425 = vpack.c.b16 %v245, %v230
  %v426 = vpack.c.b16 %v246, %v231
  %v427 = vpack.c.b16 %v247, %v232
  %v428 = vpack.c.b16 %v248, %v233
  %v429 = vpack.c.b16 %v249, %v234
  %v430 = vpack.c.b16 %v250, %v235
  %v431 = vpack.c.b16 %v251, %v236
  %v432 = vpack.c.b16 %v252, %v237
  %v433 = vpack.c.b16 %v253, %v238
  %v434 = vpack.c.b16 %v254, %v239
  %v435 = vpack.c.b16 %v255, %v240
  %v436 = vpack.c.b16 %v256, %v241
  %v437 = vpack.c.b16 %v257, %v242
  %v438 = vpack.c.b16 %v258, %v243
  %v439 = vpack.c.b16 %v259, %v244
  %v440 = vpack.c.b16 %v275, %v260
  %v441 = vpack.c.b16 %v276, %v261
  %v442 = vpack.c.b16 %v277, %v262
  %v443 = vpack.c.b16 %v278, %v263
  %v444 = vpack.c.b16 %v279, %v264
  %v445 = vpack.c.b16 %v280, %v265
  %v446 = vpack.c.b16 %v281, %v266
  %v447 = vpack.c.b16 %v282, %v267
  %v448 = vpack.c.b16 %v283, %v268
  %v449 = vpack.c.b16 %v284, %v269
  %v450 = vpack.c.b16 %v285, %v270
  %v451 = vpack.c.b16 %v286, %v271
  %v452 = vpack.c.b16 %v287, %v272
  %v453 = vpack.c.b16 %v288, %v273
  %v454 = vpack.c.b16 %v289, %v274
  %v455 = vpack.c.b16 %v305, %v290
  %v456 = vpack.c.b16 %v306, %v291
  %v457 = vpack.c.b16 %v307, %v292
  %v458 = vpack.c.b16 %v308, %v293
  %v459 = vpack.c.b16 %v309, %v294
  %v460 = vpack.c.b16 %v310, %v295
  %v461 = vpack.c.b16 %v311, %v296
  %v462 = vpack.c.b16 %v312, %v297
  %v463 = vpack.c.b16 %v313, %v298
  %v464 = vpack.c.b16 %v314, %v299
  %v465 = vpack.c.b16 %v315, %v300
  %v466 = vpack.c.b16 %v316, %v301
  %v467 = vpack.c.b16 %v317, %v302
  %v468 = vpack.c.b16 %v318, %v303
  %v469 = vpack.c.b16 %v319, %v304
  %v470 = vpack.c.b16 %v335, %v320
  %v471 = vpack.c.b16 %v336, %v321
  %v472 = vpack.c.b16 %v337, %v322
  %v473 = vpack.c.b16 %v338, %v323
  %v474 = vpack.c.b16 %v339, %v324
  %v475 = vpack.c.b16 %v340, %v325
  %v476 = vpack.c.b16 %v341, %v326
  %v477 = vpack.c.b16 %v342, %v327
  %v478 = vpack.c.b16 %v343, %v328
  %v479 = vpack.c.b16 %v344, %v329
  %v480 = vpack.c.b16 %v345, %v330
  %v481 = vpack.c.b16 %v346, %v331
  %v482 = vpack.c.b16 %v347, %v332
  %v483 = vpack.c.b16 %v348, %v333
  %v484 = vpack.c.b16 %v349, %v334
  %v485 = vpack.c.b16 %v365, %v350
  %v486 = vpack.c.b16 %v366, %v351
  %v487 = vpack.c.b16 %v367, %v352
  %v488 = vpack.c.b16 %v368, %v353
  %v489 = vpack.c.b16 %v369, %v354
  %v490 = vpack.c.b16 %v370, %v355
  %v491 = vpack.c.b16 %v371, %v356
  %v492 = vpack.c.b16 %v372, %v357
  %v493 = vpack.c.b16 %v373, %v358
  %v494 = vpack.c.b16 %v374, %v359
  %v495 = vpack.c.b16 %v375, %v360
  %v496 = vpack.c.b16 %v376, %v361
  %v497 = vpack.c.b16 %v377, %v362
  %v498 = vpack.c.b16 %v378, %v363
  %v499 = vpack.c.b16 %v379, %v364
  %v500 = vpack.c.b16 %v395, %v380
  %v501 = vpack.c.b16 %v396, %v381
  %v502 = vpack.c.b16 %v397, %v382
  %v503 = vpack.c.b16 %v398, %v383
  %v504 = vpack.c.b16 %v399, %v384
  %v505 = vpack.c.b16 %v400, %v385
  %v506 = vpack.c.b16 %v401, %v386
  %v507 = vpack.c.b16 %v402, %v387
  %v508 = vpack.c.b16 %v403, %v388
  %v509 = vpack.c.b16 %v404, %v389
  %v510 = vpack.c.b16 %v405, %v390
  %v511 = vpack.c.b16 %v406, %v391
  %v512 = vpack.c.b16 %v407, %v392
  %v513 = vpack.c.b16 %v408, %v393
  %v514 = vpack.c.b16 %v409, %v394
  %v515 = vpack.c.b16 %v410, %v410
  %v516 = vpack.c.b16 %v411, %v411
  %v517 = vpack.c.b16 %v412, %v412
  %v518 = vpack.c.b16 %v413, %v413
  %v519 = vpack.c.b16 %v414, %v414
  %v520 = vpack.c.b16 %v415, %v415
  %v521 = vpack.c.b16 %v416, %v416
  %v522 = vpack.c.b16 %v417, %v417
  %v523 = vpack.c.b16 %v418, %v418
  %v524 = vpack.c.b16 %v419, %v419
  %v525 = vpack.c.b16 %v420, %v420
  %v526 = vpack.c.b16 %v421, %v421
  %v527 = vpack.c.b16 %v422, %v422
  %v528 = vpack.c.b16 %v423, %v423
  %v529 = vpack.c.b16 %v424, %v424
  %vm620 = vcmask 818176
  %v622 = vsel %vm620, %v15, 0
  %vm624 = vcmask 1041408
  %v626 = vsel %vm624, %v515, 0
  %v629 = vsel %vm624, %v516, 0
  %v632 = vsel %vm624, %v517, 0
  %v635 = vsel %vm624, %v518, 0
  %v638 = vsel %vm624, %v519, 0
  %v641 = vsel %vm624, %v520, 0
  %v644 = vsel %vm624, %v521, 0
  %v647 = vsel %vm624, %v522, 0
  %v650 = vsel %vm624, %v523, 0
  %v653 = vsel %vm624, %v524, 0
  %v656 = vsel %vm624, %v525, 0
  %v659 = vsel %vm624, %v526, 0
  %v662 = vsel %vm624, %v527, 0
  %v665 = vsel %vm624, %v528, 0
  %v668 = vsel %vm624, %v529, 0
  %670 = vmatpush.bf16.msra.mxu0 0
  %671 = vmatpush.bf16.msra.mxu0 %v626
  %672 = vmatpush.bf16.msra.mxu0 %v500
  %673 = vmatpush.bf16.msra.mxu0 %v485
  %674 = vmatpush.bf16.msra.mxu0 %v470
  %675 = vmatpush.bf16.msra.mxu0 %v455
  %676 = vmatpush.bf16.msra.mxu0 %v440
  %677 = vmatpush.bf16.msra.mxu0 %v425
  %678 = vmatmul.bf16.gmra.mxu0 %v622
  %v679 = vpop.f32.mrf.mxu0
  %v680 = vadd.f32 %v124, %v679
  %v681 = vpop.f32.mrf.mxu0
  %682 = vdwg.mxu0
  %683 = vmatpush.bf16.msra.mxu0 0
  %684 = vmatpush.bf16.msra.mxu0 %v629
  %685 = vmatpush.bf16.msra.mxu0 %v501
  %686 = vmatpush.bf16.msra.mxu0 %v486
  %687 = vmatpush.bf16.msra.mxu0 %v471
  %688 = vmatpush.bf16.msra.mxu0 %v456
  %689 = vmatpush.bf16.msra.mxu0 %v441
  %690 = vmatpush.bf16.msra.mxu0 %v426
  %691 = vmatmul.bf16.gmra.mxu0 %v622
  %v692 = vpop.f32.mrf.mxu0
  %v693 = vadd.f32 %v124, %v692
  %v694 = vpop.f32.mrf.mxu0
  %695 = vdwg.mxu0
  %696 = vmatpush.bf16.msra.mxu0 0
  %697 = vmatpush.bf16.msra.mxu0 %v632
  %698 = vmatpush.bf16.msra.mxu0 %v502
  %699 = vmatpush.bf16.msra.mxu0 %v487
  %700 = vmatpush.bf16.msra.mxu0 %v472
  %701 = vmatpush.bf16.msra.mxu0 %v457
  %702 = vmatpush.bf16.msra.mxu0 %v442
  %703 = vmatpush.bf16.msra.mxu0 %v427
  %704 = vmatmul.bf16.gmra.mxu0 %v622
  %v705 = vpop.f32.mrf.mxu0
  %v706 = vadd.f32 %v124, %v705
  %v707 = vpop.f32.mrf.mxu0
  %708 = vdwg.mxu0
  %709 = vmatpush.bf16.msra.mxu0 0
  %710 = vmatpush.bf16.msra.mxu0 %v635
  %711 = vmatpush.bf16.msra.mxu0 %v503
  %712 = vmatpush.bf16.msra.mxu0 %v488
  %713 = vmatpush.bf16.msra.mxu0 %v473
  %714 = vmatpush.bf16.msra.mxu0 %v458
  %715 = vmatpush.bf16.msra.mxu0 %v443
  %716 = vmatpush.bf16.msra.mxu0 %v428
  %717 = vmatmul.bf16.gmra.mxu0 %v622
  %v718 = vpop.f32.mrf.mxu0
  %v719 = vadd.f32 %v124, %v718
  %v720 = vpop.f32.mrf.mxu0
  %721 = vdwg.mxu0
  %722 = vmatpush.bf16.msra.mxu0 0
  %723 = vmatpush.bf16.msra.mxu0 %v638
  %724 = vmatpush.bf16.msra.mxu0 %v504
  %725 = vmatpush.bf16.msra.mxu0 %v489
  %726 = vmatpush.bf16.msra.mxu0 %v474
  %727 = vmatpush.bf16.msra.mxu0 %v459
  %728 = vmatpush.bf16.msra.mxu0 %v444
  %729 = vmatpush.bf16.msra.mxu0 %v429
  %730 = vmatmul.bf16.gmra.mxu0 %v622
  %v731 = vpop.f32.mrf.mxu0
  %v732 = vadd.f32 %v124, %v731
  %v733 = vpop.f32.mrf.mxu0
  %734 = vdwg.mxu0
  %735 = vmatpush.bf16.msra.mxu0 0
  %736 = vmatpush.bf16.msra.mxu0 %v641
  %737 = vmatpush.bf16.msra.mxu0 %v505
  %738 = vmatpush.bf16.msra.mxu0 %v490
  %739 = vmatpush.bf16.msra.mxu0 %v475
  %740 = vmatpush.bf16.msra.mxu0 %v460
  %741 = vmatpush.bf16.msra.mxu0 %v445
  %742 = vmatpush.bf16.msra.mxu0 %v430
  %743 = vmatmul.bf16.gmra.mxu0 %v622
  %v744 = vpop.f32.mrf.mxu0
  %v745 = vadd.f32 %v124, %v744
  %v746 = vpop.f32.mrf.mxu0
  %747 = vdwg.mxu0
  %748 = vmatpush.bf16.msra.mxu0 0
  %749 = vmatpush.bf16.msra.mxu0 %v644
  %750 = vmatpush.bf16.msra.mxu0 %v506
  %751 = vmatpush.bf16.msra.mxu0 %v491
  %752 = vmatpush.bf16.msra.mxu0 %v476
  %753 = vmatpush.bf16.msra.mxu0 %v461
  %754 = vmatpush.bf16.msra.mxu0 %v446
  %755 = vmatpush.bf16.msra.mxu0 %v431
  %756 = vmatmul.bf16.gmra.mxu0 %v622
  %v757 = vpop.f32.mrf.mxu0
  %v758 = vadd.f32 %v124, %v757
  %v759 = vpop.f32.mrf.mxu0
  %760 = vdwg.mxu0
  %761 = vmatpush.bf16.msra.mxu0 0
  %762 = vmatpush.bf16.msra.mxu0 %v647
  %763 = vmatpush.bf16.msra.mxu0 %v507
  %764 = vmatpush.bf16.msra.mxu0 %v492
  %765 = vmatpush.bf16.msra.mxu0 %v477
  %766 = vmatpush.bf16.msra.mxu0 %v462
  %767 = vmatpush.bf16.msra.mxu0 %v447
  %768 = vmatpush.bf16.msra.mxu0 %v432
  %769 = vmatmul.bf16.gmra.mxu0 %v622
  %v770 = vpop.f32.mrf.mxu0
  %v771 = vadd.f32 %v124, %v770
  %v772 = vpop.f32.mrf.mxu0
  %773 = vdwg.mxu0
  %774 = vmatpush.bf16.msra.mxu0 0
  %775 = vmatpush.bf16.msra.mxu0 %v650
  %776 = vmatpush.bf16.msra.mxu0 %v508
  %777 = vmatpush.bf16.msra.mxu0 %v493
  %778 = vmatpush.bf16.msra.mxu0 %v478
  %779 = vmatpush.bf16.msra.mxu0 %v463
  %780 = vmatpush.bf16.msra.mxu0 %v448
  %781 = vmatpush.bf16.msra.mxu0 %v433
  %782 = vmatmul.bf16.gmra.mxu0 %v622
  %v783 = vpop.f32.mrf.mxu0
  %v784 = vadd.f32 %v124, %v783
  %v785 = vpop.f32.mrf.mxu0
  %786 = vdwg.mxu0
  %787 = vmatpush.bf16.msra.mxu0 0
  %788 = vmatpush.bf16.msra.mxu0 %v653
  %789 = vmatpush.bf16.msra.mxu0 %v509
  %790 = vmatpush.bf16.msra.mxu0 %v494
  %791 = vmatpush.bf16.msra.mxu0 %v479
  %792 = vmatpush.bf16.msra.mxu0 %v464
  %793 = vmatpush.bf16.msra.mxu0 %v449
  %794 = vmatpush.bf16.msra.mxu0 %v434
  %795 = vmatmul.bf16.gmra.mxu0 %v622
  %v796 = vpop.f32.mrf.mxu0
  %v797 = vadd.f32 %v124, %v796
  %v798 = vpop.f32.mrf.mxu0
  %799 = vdwg.mxu0
  %800 = vmatpush.bf16.msra.mxu0 0
  %801 = vmatpush.bf16.msra.mxu0 %v656
  %802 = vmatpush.bf16.msra.mxu0 %v510
  %803 = vmatpush.bf16.msra.mxu0 %v495
  %804 = vmatpush.bf16.msra.mxu0 %v480
  %805 = vmatpush.bf16.msra.mxu0 %v465
  %806 = vmatpush.bf16.msra.mxu0 %v450
  %807 = vmatpush.bf16.msra.mxu0 %v435
  %808 = vmatmul.bf16.gmra.mxu0 %v622
  %v809 = vpop.f32.mrf.mxu0
  %v810 = vadd.f32 %v124, %v809
  %v811 = vpop.f32.mrf.mxu0
  %812 = vdwg.mxu0
  %813 = vmatpush.bf16.msra.mxu0 0
  %814 = vmatpush.bf16.msra.mxu0 %v659
  %815 = vmatpush.bf16.msra.mxu0 %v511
  %816 = vmatpush.bf16.msra.mxu0 %v496
  %817 = vmatpush.bf16.msra.mxu0 %v481
  %818 = vmatpush.bf16.msra.mxu0 %v466
  %819 = vmatpush.bf16.msra.mxu0 %v451
  %820 = vmatpush.bf16.msra.mxu0 %v436
  %821 = vmatmul.bf16.gmra.mxu0 %v622
  %v822 = vpop.f32.mrf.mxu0
  %v823 = vadd.f32 %v124, %v822
  %v824 = vpop.f32.mrf.mxu0
  %825 = vdwg.mxu0
  %826 = vmatpush.bf16.msra.mxu0 0
  %827 = vmatpush.bf16.msra.mxu0 %v662
  %828 = vmatpush.bf16.msra.mxu0 %v512
  %829 = vmatpush.bf16.msra.mxu0 %v497
  %830 = vmatpush.bf16.msra.mxu0 %v482
  %831 = vmatpush.bf16.msra.mxu0 %v467
  %832 = vmatpush.bf16.msra.mxu0 %v452
  %833 = vmatpush.bf16.msra.mxu0 %v437
  %834 = vmatmul.bf16.gmra.mxu0 %v622
  %v835 = vpop.f32.mrf.mxu0
  %v836 = vadd.f32 %v124, %v835
  %v837 = vpop.f32.mrf.mxu0
  %838 = vdwg.mxu0
  %839 = vmatpush.bf16.msra.mxu0 0
  %840 = vmatpush.bf16.msra.mxu0 %v665
  %841 = vmatpush.bf16.msra.mxu0 %v513
  %842 = vmatpush.bf16.msra.mxu0 %v498
  %843 = vmatpush.bf16.msra.mxu0 %v483
  %844 = vmatpush.bf16.msra.mxu0 %v468
  %845 = vmatpush.bf16.msra.mxu0 %v453
  %846 = vmatpush.bf16.msra.mxu0 %v438
  %847 = vmatmul.bf16.gmra.mxu0 %v622
  %v848 = vpop.f32.mrf.mxu0
  %v849 = vadd.f32 %v124, %v848
  %v850 = vpop.f32.mrf.mxu0
  %851 = vdwg.mxu0
  %852 = vmatpush.bf16.msra.mxu0 0
  %853 = vmatpush.bf16.msra.mxu0 %v668
  %854 = vmatpush.bf16.msra.mxu0 %v514
  %855 = vmatpush.bf16.msra.mxu0 %v499
  %856 = vmatpush.bf16.msra.mxu0 %v484
  %857 = vmatpush.bf16.msra.mxu0 %v469
  %858 = vmatpush.bf16.msra.mxu0 %v454
  %859 = vmatpush.bf16.msra.mxu0 %v439
  %860 = vmatmul.bf16.gmra.mxu0 %v622
  %v861 = vpop.f32.mrf.mxu0
  %v862 = vadd.f32 %v124, %v861
  %v863 = vpop.f32.mrf.mxu0
  %864 = vdwg.mxu0
  %v865 = vmax.f32 %v680, 0.0
  %v866 = vmax.f32 %v693, 0.0
  %v867 = vmax.f32 %v706, 0.0
  %v868 = vmax.f32 %v719, 0.0
  %v869 = vmax.f32 %v732, 0.0
  %v870 = vmax.f32 %v745, 0.0
  %v871 = vmax.f32 %v758, 0.0
  %v872 = vmax.f32 %v771, 0.0
  %v873 = vmax.f32 %v784, 0.0
  %v874 = vmax.f32 %v797, 0.0
  %v875 = vmax.f32 %v810, 0.0
  %v876 = vmax.f32 %v823, 0.0
  %v877 = vmax.f32 %v836, 0.0
  %v878 = vmax.f32 %v849, 0.0
  %v879 = vmax.f32 %v862, 0.0
  %885 = vrot.lane.b32.xlu0 %v868, 32
  %v886 = vpop.permute.xlu0 %885
  %887 = vrot.lane.b32.xlu0 %v869, 32
  %v888 = vpop.permute.xlu0 %887
  %889 = vrot.lane.b32.xlu0 %v870, 32
  %v890 = vpop.permute.xlu0 %889
  %891 = vrot.lane.b32.xlu0 %v871, 32
  %v892 = vpop.permute.xlu0 %891
  %893 = vrot.lane.b32.xlu0 %v872, 32
  %v894 = vpop.permute.xlu0 %893
  %vm895 = vcmask 261120
  %v896 = vsel %vm895, %v886, %v888
  %v897 = vsel %vm895, %v888, %v890
  %v898 = vsel %vm895, %v890, %v892
  %v899 = vsel %vm895, %v892, %v894
  %v904 = vmax.f32 %v865, %v896
  %v905 = vmax.f32 %v866, %v897
  %v906 = vmax.f32 %v867, %v898
  %v907 = vmax.f32 %v868, %v899
  %912 = vrot.lane.b32.xlu0 %v876, 32
  %v913 = vpop.permute.xlu0 %912
  %914 = vrot.lane.b32.xlu0 %v877, 32
  %v915 = vpop.permute.xlu0 %914
  %916 = vrot.lane.b32.xlu0 %v878, 32
  %v917 = vpop.permute.xlu0 %916
  %918 = vrot.lane.b32.xlu0 %v879, 32
  %v919 = vpop.permute.xlu0 %918
  %v920 = vsel %vm895, %v913, %v915
  %v921 = vsel %vm895, %v915, %v917
  %v922 = vsel %vm895, %v917, %v919
  %v928 = vmax.f32 %v872, %v913
  %v929 = vmax.f32 %v873, %v920
  %v930 = vmax.f32 %v874, %v921
  %v931 = vmax.f32 %v875, %v922
  %v932 = vmax.f32 %v876, %v919
  %938 = vrot.lane.b32.xlu0 %v928, 64
  %v939 = vpop.permute.xlu0 %938
  %940 = vrot.lane.b32.xlu0 %v929, 64
  %v941 = vpop.permute.xlu0 %940
  %942 = vrot.lane.b32.xlu0 %v930, 64
  %v943 = vpop.permute.xlu0 %942
  %944 = vrot.lane.b32.xlu0 %v931, 64
  %v945 = vpop.permute.xlu0 %944
  %946 = vrot.lane.b32.xlu0 %v932, 64
  %v947 = vpop.permute.xlu0 %946
  %vm948 = vcmask 523264
  %v949 = vsel %vm948, %v939, %v941
  %v950 = vsel %vm948, %v941, %v943
  %v951 = vsel %vm948, %v943, %v945
  %v952 = vsel %vm948, %v945, %v947
  %v957 = vmax.f32 %v904, %v949
  %v958 = vmax.f32 %v905, %v950
  %v959 = vmax.f32 %v906, %v951
  %v960 = vmax.f32 %v907, %v952
  %961 = vst [vmem:[%s3] sm:$0x3f] %v957
  %962 = vst [vmem:[%s3 + $0x8] sm:$0x3f] %v958
  %963 = vst [vmem:[%s3 + $0x10] sm:$0x3f] %v959
  %vm964 = vcmask 783360
  %965 = vst.msk [vmem:[%s3 + $0x18] sm:$0x3f] %vm964, %v960
  // Predicated region
  $region14: #{convnet_forward.3} parent=0 // pred_check
    _
  $region15: #{convnet_forward.3} parent=0 // pred_check_branch
    %967 = sbr.rel (0) target = $region17
  $region16: #{convnet_forward.3} parent=0 // pred_region
    _
  $region17: #{convnet_forward.3} parent=0 // pred_fallthru
    _
  // Predicated region
  $region18: #{convnet_forward.3} parent=0 // pred_check
    _
  $region19: #{convnet_forward.3} parent=0 // pred_check_branch
    %969 = sbr.rel (0) target = $region21
  $region20: #{convnet_forward.3} parent=0 // pred_region
    _
  $region21: #{convnet_forward.3} parent=0 // pred_fallthru
    _

// kernel: convnet_forward.4
$region0: #{convnet_forward.4}
  #allocation0 [shape = 'u32[]', space=smem, size = 0x4, offset = 0x4, fixed_abs, tag = 'smem constant byte address 0x4 - core index']
  #allocation1 [shape = 'u32[72,128]{1,0:T(1,128)}', space=vmem, size = 0x9000, scoped, tag = 'internal scratch']
  %s0 = inlined_call_operand.vmem [shape: bf16[16,150], index: 0, kind: input, shape index: {}]
  %s1 = inlined_call_operand.vmem [shape: bf16[150,256], index: 1, kind: input, shape index: {}]
  %s2 = inlined_call_operand.vmem [shape: f32[16,1], index: 2, kind: input, shape index: {}]
  %s3 = inlined_call_operand.vmem [shape: f32[16,64], index: 3, kind: output, shape index: {}]
  %s4 = sld [smem:[#allocation0]]
  $region22: #{convnet_forward.4} parent=0
    _
  %s6 = ssub.s32 1, %s4
  %s7 = scalar_select 0, %s6, %s4
  // Predicated region
  $region2: #{convnet_forward.4} parent=0 // pred_check
    _
  $region3: #{convnet_forward.4} parent=0 // pred_check_branch
    %9 = sbr.rel (0) target = $region5
  $region4: #{convnet_forward.4} parent=0 // pred_region
    _
  $region5: #{convnet_forward.4} parent=0 // pred_fallthru
    _
  // Predicated region
  $region6: #{convnet_forward.4} parent=0 // pred_check
    _
  $region7: #{convnet_forward.4} parent=0 // pred_check_branch
    %11 = sbr.rel (0) target = $region9
  $region8: #{convnet_forward.4} parent=0 // pred_region
    _
  $region9: #{convnet_forward.4} parent=0 // pred_fallthru
    _
  // Predicated region
  $region10: #{convnet_forward.4} parent=0 // pred_check
    _
  $region11: #{convnet_forward.4} parent=0 // pred_check_branch
    %13 = sbr.rel (0) target = $region13
  $region12: #{convnet_forward.4} parent=0 // pred_region
    _
  $region13: #{convnet_forward.4} parent=0 // pred_fallthru
    _
  %v15 = vld [vmem:[%s0] sm:$0xff]
  %v16 = vld [vmem:[%s0 + $0x8] sm:$0xff]
  %v17 = vld [vmem:[%s1] sm:$0xff]
  %v18 = vld [vmem:[%s1 + $0x8] sm:$0xff]
  %v19 = vld [vmem:[%s1 + $0x10] sm:$0xff]
  %v20 = vld [vmem:[%s1 + $0x18] sm:$0xff]
  %v21 = vld [vmem:[%s1 + $0x20] sm:$0xff]
  %v22 = vld [vmem:[%s1 + $0x28] sm:$0xff]
  %v23 = vld [vmem:[%s1 + $0x30] sm:$0xff]
  %v24 = vld [vmem:[%s1 + $0x38] sm:$0xff]
  %v25 = vld [vmem:[%s1 + $0x40] sm:$0xff]
  %v26 = vld [vmem:[%s1 + $0x48] sm:$0xff]
  %v27 = vld [vmem:[%s1 + $0x50] sm:$0xff]
  %v28 = vld [vmem:[%s1 + $0x58] sm:$0xff]
  %v29 = vld [vmem:[%s1 + $0x60] sm:$0xff]
  %v30 = vld [vmem:[%s1 + $0x68] sm:$0xff]
  %v31 = vld [vmem:[%s1 + $0x70] sm:$0xff]
  %v32 = vld [vmem:[%s1 + $0x78] sm:$0xff]
  %v33 = vld [vmem:[%s1 + $0x80] sm:$0xff]
  %v34 = vld [vmem:[%s1 + $0x88] sm:$0xff]
  %v35 = vld [vmem:[%s1 + $0x90] sm:$0x77]
  %v36 = vld [vmem:[%s2] sm:$0xff]
  %v37 = vld [vmem:[%s2 + $0x8] sm:$0xff]
  %39 = vset.pattern.permute.xlu0 0
  %40 = vperm.xlu0 %39, %v36
  %v41 = vpop.permute.xlu0 %40
  %44 = vset.pattern.permute.xlu0 0
  %45 = vperm.xlu0 %44, %v37
  %v46 = vpop.permute.xlu0 %45
  %v50 = vunpack.c.l.b16 %v15
  %v51 = vunpack.c.h.b16 %v15
  %v52 = vunpack.c.l.b16 %v16
  %v53 = vunpack.c.h.b16 %v16
  %v54 = vpack.c.b16 %v52, %v50
  %v55 = vpack.c.b16 %v53, %v51
  %v76 = vunpack.c.l.b16 %v17
  %v77 = vunpack.c.h.b16 %v17
  %v78 = vunpack.c.l.b16 %v18
  %v79 = vunpack.c.h.b16 %v18
  %v80 = vunpack.c.l.b16 %v19
  %v81 = vunpack.c.h.b16 %v19
  %v82 = vunpack.c.l.b16 %v20
  %v83 = vunpack.c.h.b16 %v20
  %v84 = vunpack.c.l.b16 %v21
  %v85 = vunpack.c.h.b16 %v21
  %v86 = vunpack.c.l.b16 %v22
  %v87 = vunpack.c.h.b16 %v22
  %v88 = vunpack.c.l.b16 %v23
  %v89 = vunpack.c.h.b16 %v23
  %v90 = vunpack.c.l.b16 %v24
  %v91 = vunpack.c.h.b16 %v24
  %v92 = vunpack.c.l.b16 %v25
  %v93 = vunpack.c.h.b16 %v25
  %v94 = vunpack.c.l.b16 %v26
  %v95 = vunpack.c.h.b16 %v26
  %v96 = vunpack.c.l.b16 %v27
  %v97 = vunpack.c.h.b16 %v27
  %v98 = vunpack.c.l.b16 %v28
  %v99 = vunpack.c.h.b16 %v28
  %v100 = vunpack.c.l.b16 %v29
  %v101 = vunpack.c.h.b16 %v29
  %v102 = vunpack.c.l.b16 %v30
  %v103 = vunpack.c.h.b16 %v30
  %v104 = vunpack.c.l.b16 %v31
  %v105 = vunpack.c.h.b16 %v31
  %v106 = vunpack.c.l.b16 %v32
  %v107 = vunpack.c.h.b16 %v32
  %v108 = vunpack.c.l.b16 %v33
  %v109 = vunpack.c.h.b16 %v33
  %v110 = vunpack.c.l.b16 %v34
  %v111 = vunpack.c.h.b16 %v34
  %v112 = vunpack.c.l.b16 %v35
  %v113 = vunpack.c.h.b16 %v35
  %v114 = vpack.c.b16 %v78, %v76
  %v115 = vpack.c.b16 %v79, %v77
  %v116 = vpack.c.b16 %v82, %v80
  %v117 = vpack.c.b16 %v83, %v81
  %v118 = vpack.c.b16 %v86, %v84
  %v119 = vpack.c.b16 %v87, %v85
  %v120 = vpack.c.b16 %v90, %v88
  %v121 = vpack.c.b16 %v91, %v89
  %v122 = vpack.c.b16 %v94, %v92
  %v123 = vpack.c.b16 %v95, %v93
  %v124 = vpack.c.b16 %v98, %v96
  %v125 = vpack.c.b16 %v99, %v97
  %v126 = vpack.c.b16 %v102, %v100
  %v127 = vpack.c.b16 %v103, %v101
  %v128 = vpack.c.b16 %v106, %v104
  %v129 = vpack.c.b16 %v107, %v105
  %v130 = vpack.c.b16 %v110, %v108
  %v131 = vpack.c.b16 %v111, %v109
  %v132 = vpack.c.b16 %v112, %v112
  %v133 = vpack.c.b16 %v113, %v113
  %vm152 = vcmask 179200
  %v154 = vsel %vm152, %v55, 0
  %vm156 = vcmask 1042432
  %v158 = vsel %vm156, %v132, 0
  %v161 = vsel %vm156, %v133, 0
  %163 = vmatpush.bf16.msra.mxu0 %v128
  %164 = vmatpush.bf16.msra.mxu0 %v126
  %165 = vmatpush.bf16.msra.mxu0 %v124
  %166 = vmatpush.bf16.msra.mxu0 %v122
  %167 = vmatpush.bf16.msra.mxu0 %v120
  %168 = vmatpush.bf16.msra.mxu0 %v118
  %169 = vmatpush.bf16.msra.mxu0 %v116
  %170 = vmatpush.bf16.msra.mxu0 %v114
  %171 = vmatmul.bf16.gmra.mxu0 %v54
  %v172 = vpop.f32.mrf.mxu0
  %v173 = vadd.f32 %v41, %v172
  %v174 = vpop.f32.mrf.mxu0
  %v175 = vadd.f32 %v46, %v174
  %176 = vdwg.mxu0
  %177 = vmatpush.bf16.msra.mxu0 0
  %178 = vmatpush.bf16.msra.mxu0 0
  %179 = vmatpush.bf16.msra.mxu0 0
  %180 = vmatpush.bf16.msra.mxu0 0
  %181 = vmatpush.bf16.msra.mxu0 0
  %182 = vmatpush.bf16.msra.mxu0 0
  %183 = vmatpush.bf16.msra.mxu0 %v158
  %184 = vmatpush.bf16.msra.mxu0 %v130
  %185 = vmatmul.bf16.gmra.mxu0 %v154
  %v186 = vpop.f32.mrf.mxu0
  %v187 = vadd.f32 %v173, %v186
  %v188 = vpop.f32.mrf.mxu0
  %v189 = vadd.f32 %v175, %v188
  %190 = vdwg.mxu0
  %191 = vmatpush.bf16.msra.mxu0 %v129
  %192 = vmatpush.bf16.msra.mxu0 %v127
  %193 = vmatpush.bf16.msra.mxu0 %v125
  %194 = vmatpush.bf16.msra.mxu0 %v123
  %195 = vmatpush.bf16.msra.mxu0 %v121
  %196 = vmatpush.bf16.msra.mxu0 %v119
  %197 = vmatpush.bf16.msra.mxu0 %v117
  %198 = vmatpush.bf16.msra.mxu0 %v115
  %199 = vmatmul.bf16.gmra.mxu0 %v54
  %v200 = vpop.f32.mrf.mxu0
  %v201 = vadd.f32 %v41, %v200
  %v202 = vpop.f32.mrf.mxu0
  %v203 = vadd.f32 %v46, %v202
  %204 = vdwg.mxu0
  %205 = vmatpush.bf16.msra.mxu0 0
  %206 = vmatpush.bf16.msra.mxu0 0
  %207 = vmatpush.bf16.msra.mxu0 0
  %208 = vmatpush.bf16.msra.mxu0 0
  %209 = vmatpush.bf16.msra.mxu0 0
  %210 = vmatpush.bf16.msra.mxu0 0
  %211 = vmatpush.bf16.msra.mxu0 %v161
  %212 = vmatpush.bf16.msra.mxu0 %v131
  %213 = vmatmul.bf16.gmra.mxu0 %v154
  %v214 = vpop.f32.mrf.mxu0
  %v215 = vadd.f32 %v201, %v214
  %v216 = vpop.f32.mrf.mxu0
  %v217 = vadd.f32 %v203, %v216
  %218 = vdwg.mxu0
  %v219 = vmax.f32 %v187, 0.0
  %v220 = vmax.f32 %v215, 0.0
  %v221 = vmax.f32 %v189, 0.0
  %v222 = vmax.f32 %v217, 0.0
  %225 = vrot.lane.b32.xlu0 %v219, 64
  %v226 = vpop.permute.xlu0 %225
  %227 = vrot.lane.b32.xlu0 %v221, 64
  %v228 = vpop.permute.xlu0 %227
  %v231 = vmax.f32 %v219, %v226
  %v232 = vmax.f32 %v221, %v228
  %235 = vrot.lane.b32.xlu0 %v220, 64
  %v236 = vpop.permute.xlu0 %235
  %237 = vrot.lane.b32.xlu0 %v222, 64
  %v238 = vpop.permute.xlu0 %237
  %v241 = vmax.f32 %v220, %v236
  %v242 = vmax.f32 %v222, %v238
  %v243 = vmax.f32 %v231, %v241
  %v244 = vmax.f32 %v232, %v242
  %vm245 = vcmask 523264
  %246 = vst.msk [vmem:[%s3] sm:$0xff] %vm245, %v243
  %247 = vst.msk [vmem:[%s3 + $0x8] sm:$0xff] %vm245, %v244
  // Predicated region
  $region14: #{convnet_forward.4} parent=0 // pred_check
    _
  $region15: #{convnet_forward.4} parent=0 // pred_check_branch
    %249 = sbr.rel (0) target = $region17
  $region16: #{convnet_forward.4} parent=0 // pred_region
    _
  $region17: #{convnet_forward.4} parent=0 // pred_fallthru
    _
  // Predicated region
  $region18: #{convnet_forward.4} parent=0 // pred_check
    _
  $region19: #{convnet_forward.4} parent=0 // pred_check_branch
    %251 = sbr.rel (0) target = $region21
  $region20: #{convnet_forward.4} parent=0 // pred_region
    _
  $region21: #{convnet_forward.4} parent=0 // pred_fallthru
    _

// kernel: convnet_forward.5
$region0: #{convnet_forward.5}
  #allocation0 [shape = 'u32[]', space=smem, size = 0x4, offset = 0x4, fixed_abs, tag = 'smem constant byte address 0x4 - core index']
  #allocation1 [shape = 'u32[72,128]{1,0:T(1,128)}', space=vmem, size = 0x9000, scoped, tag = 'internal scratch']
  %s0 = inlined_call_operand.vmem [shape: bf16[2,512], index: 0, kind: input, shape index: {}]
  %s1 = inlined_call_operand.vmem [shape: bf16[512,120], index: 1, kind: input, shape index: {}]
  %s2 = inlined_call_operand.vmem [shape: f32[1,120], index: 2, kind: input, shape index: {}]
  %s3 = inlined_call_operand.vmem [shape: bf16[120,84], index: 3, kind: input, shape index: {}]
  %s4 = inlined_call_operand.vmem [shape: f32[1,84], index: 4, kind: input, shape index: {}]
  %s5 = inlined_call_operand.vmem [shape: bf16[84,10], index: 5, kind: input, shape index: {}]
  %s6 = inlined_call_operand.vmem [shape: f32[1,10], index: 6, kind: input, shape index: {}]
  %s7 = inlined_call_operand.hbm [shape: f32[2,10], index: 7, kind: output, shape index: {}]
  %s8 = sld [smem:[#allocation0]]
  $region38: #{convnet_forward.5} parent=0
    _
  %s10 = ssub.s32 1, %s8
  %s11 = scalar_select 0, %s10, %s8
  $region1: #{convnet_forward.5} parent=0
    #allocation2 [shape = 'u8[1024]{0}', space=vmem, size = 0x400, scoped, tag = 'output window, operand 0, single buffered']
    #allocation3 [shape = 's32[1]{0}', space=sflag, size = 0x4, scoped, tag = 'scoped memory for convnet_forward.5']
    %12 = vsyncpa [#allocation3], 0
    // Predicated region
    $region2: #{convnet_forward.5} parent=1 // pred_check
      _
    $region3: #{convnet_forward.5} parent=1 // pred_check_branch
      %14 = sbr.rel (0) target = $region5
    $region4: #{convnet_forward.5} parent=1 // pred_region
      _
    $region5: #{convnet_forward.5} parent=1 // pred_fallthru
      _
    // Predicated region
    $region6: #{convnet_forward.5} parent=1 // pred_check
      _
    $region7: #{convnet_forward.5} parent=1 // pred_check_branch
      %16 = sbr.rel (0) target = $region9
    $region8: #{convnet_forward.5} parent=1 // pred_region
      _
    $region9: #{convnet_forward.5} parent=1 // pred_fallthru
      _
    // Predicated region
    $region10: #{convnet_forward.5} parent=1 // pred_check
      _
    $region11: #{convnet_forward.5} parent=1 // pred_check_branch
      %18 = sbr.rel (0) target = $region13
    $region12: #{convnet_forward.5} parent=1 // pred_region
      _
    $region13: #{convnet_forward.5} parent=1 // pred_fallthru
      _
    // Predicated region
    $region14: #{convnet_forward.5} parent=1 // pred_check
      _
    $region15: #{convnet_forward.5} parent=1 // pred_check_branch
      %20 = sbr.rel (0) target = $region17
    $region16: #{convnet_forward.5} parent=1 // pred_region
      _
    $region17: #{convnet_forward.5} parent=1 // pred_fallthru
      _
    // Predicated region
    $region18: #{convnet_forward.5} parent=1 // pred_check
      _
    $region19: #{convnet_forward.5} parent=1 // pred_check_branch
      %22 = sbr.rel (0) target = $region21
    $region20: #{convnet_forward.5} parent=1 // pred_region
      _
    $region21: #{convnet_forward.5} parent=1 // pred_fallthru
      _
    // Predicated region
    $region22: #{convnet_forward.5} parent=1 // pred_check
      _
    $region23: #{convnet_forward.5} parent=1 // pred_check_branch
      %24 = sbr.rel (0) target = $region25
    $region24: #{convnet_forward.5} parent=1 // pred_region
      _
    $region25: #{convnet_forward.5} parent=1 // pred_fallthru
      _
    // Predicated region
    $region26: #{convnet_forward.5} parent=1 // pred_check
      _
    $region27: #{convnet_forward.5} parent=1 // pred_check_branch
      %26 = sbr.rel (0) target = $region29
    $region28: #{convnet_forward.5} parent=1 // pred_region
      _
    $region29: #{convnet_forward.5} parent=1 // pred_fallthru
      _
    %v28 = vld [vmem:[%s0] sm:$0xf]
    %v29 = vld [vmem:[%s1] sm:$0xf]
    %v30 = vld [vmem:[%s1 + $0x4] sm:$0xf]
    %v31 = vld [vmem:[%s1 + $0x8] sm:$0xf]
    %v32 = vld [vmem:[%s1 + $0xc] sm:$0xf]
    %v33 = vld [vmem:[%s1 + $0x10] sm:$0xf]
    %v34 = vld [vmem:[%s1 + $0x14] sm:$0xf]
    %v35 = vld [vmem:[%s1 + $0x18] sm:$0xf]
    %v36 = vld [vmem:[%s1 + $0x1c] sm:$0xf]
    %v37 = vld [vmem:[%s1 + $0x20] sm:$0xf]
    %v38 = vld [vmem:[%s1 + $0x24] sm:$0xf]
    %v39 = vld [vmem:[%s1 + $0x28] sm:$0xf]
    %v40 = vld [vmem:[%s1 + $0x2c] sm:$0xf]
    %v41 = vld [vmem:[%s1 + $0x30] sm:$0xf]
    %v42 = vld [vmem:[%s1 + $0x34] sm:$0xf]
    %v43 = vld [vmem:[%s1 + $0x38] sm:$0xf]
    %v44 = vld [vmem:[%s1 + $0x3c] sm:$0xf]
    %v45 = vld [vmem:[%s1 + $0x40] sm:$0xf]
    %v46 = vld [vmem:[%s1 + $0x44] sm:$0xf]
    %v47 = vld [vmem:[%s1 + $0x48] sm:$0xf]
    %v48 = vld [vmem:[%s1 + $0x4c] sm:$0xf]
    %v49 = vld [vmem:[%s1 + $0x50] sm:$0xf]
    %v50 = vld [vmem:[%s1 + $0x54] sm:$0xf]
    %v51 = vld [vmem:[%s1 + $0x58] sm:$0xf]
    %v52 = vld [vmem:[%s1 + $0x5c] sm:$0xf]
    %v53 = vld [vmem:[%s1 + $0x60] sm:$0xf]
    %v54 = vld [vmem:[%s1 + $0x64] sm:$0xf]
    %v55 = vld [vmem:[%s1 + $0x68] sm:$0xf]
    %v56 = vld [vmem:[%s1 + $0x6c] sm:$0xf]
    %v57 = vld [vmem:[%s1 + $0x70] sm:$0xf]
    %v58 = vld [vmem:[%s1 + $0x74] sm:$0xf]
    %v59 = vld [vmem:[%s1 + $0x78] sm:$0xf]
    %v60 = vld [vmem:[%s1 + $0x7c] sm:$0xf]
    %v61 = vld [vmem:[%s1 + $0x80] sm:$0xf]
    %v62 = vld [vmem:[%s1 + $0x84] sm:$0xf]
    %v63 = vld [vmem:[%s1 + $0x88] sm:$0xf]
    %v64 = vld [vmem:[%s1 + $0x8c] sm:$0xf]
    %v65 = vld [vmem:[%s1 + $0x90] sm:$0xf]
    %v66 = vld [vmem:[%s1 + $0x94] sm:$0xf]
    %v67 = vld [vmem:[%s1 + $0x98] sm:$0xf]
    %v68 = vld [vmem:[%s1 + $0x9c] sm:$0xf]
    %v69 = vld [vmem:[%s1 + $0xa0] sm:$0xf]
    %v70 = vld [vmem:[%s1 + $0xa4] sm:$0xf]
    %v71 = vld [vmem:[%s1 + $0xa8] sm:$0xf]
    %v72 = vld [vmem:[%s1 + $0xac] sm:$0xf]
    %v73 = vld [vmem:[%s1 + $0xb0] sm:$0xf]
    %v74 = vld [vmem:[%s1 + $0xb4] sm:$0xf]
    %v75 = vld [vmem:[%s1 + $0xb8] sm:$0xf]
    %v76 = vld [vmem:[%s1 + $0xbc] sm:$0xf]
    %v77 = vld [vmem:[%s1 + $0xc0] sm:$0xf]
    %v78 = vld [vmem:[%s1 + $0xc4] sm:$0xf]
    %v79 = vld [vmem:[%s1 + $0xc8] sm:$0xf]
    %v80 = vld [vmem:[%s1 + $0xcc] sm:$0xf]
    %v81 = vld [vmem:[%s1 + $0xd0] sm:$0xf]
    %v82 = vld [vmem:[%s1 + $0xd4] sm:$0xf]
    %v83 = vld [vmem:[%s1 + $0xd8] sm:$0xf]
    %v84 = vld [vmem:[%s1 + $0xdc] sm:$0xf]
    %v85 = vld [vmem:[%s1 + $0xe0] sm:$0xf]
    %v86 = vld [vmem:[%s1 + $0xe4] sm:$0xf]
    %v87 = vld [vmem:[%s1 + $0xe8] sm:$0xf]
    %v88 = vld [vmem:[%s1 + $0xec] sm:$0xf]
    %v89 = vld [vmem:[%s1 + $0xf0] sm:$0xf]
    %v90 = vld [vmem:[%s1 + $0xf4] sm:$0xf]
    %v91 = vld [vmem:[%s1 + $0xf8] sm:$0xf]
    %v92 = vld [vmem:[%s1 + $0xfc] sm:$0xf]
    %v93 = vld [vmem:[%s2] sm:$0x1]
    %v95 = vperm.slane %v93, 0
    %98 = vst [vmem:[#allocation1] ss:$9 sm:$0xff] %v28
    %v99 = vld [vmem:[#allocation1] sm:$0xff]
    %v100 = vld [vmem:[#allocation1 + $0x9] sm:$0xff]
    %v101 = vld [vmem:[#allocation1 + $0x12] sm:$0xff]
    %v102 = vld [vmem:[#allocation1 + $0x1b] sm:$0xff]
    %v171 = vunpack.c.l.b16 %v29
    %v172 = vunpack.c.l.b16 %v30
    %v173 = vunpack.c.l.b16 %v31
    %v174 = vunpack.c.l.b16 %v32
    %v175 = vunpack.c.l.b16 %v33
    %v176 = vunpack.c.l.b16 %v34
    %v177 = vunpack.c.l.b16 %v35
    %v178 = vunpack.c.l.b16 %v36
    %v179 = vunpack.c.l.b16 %v37
    %v180 = vunpack.c.l.b16 %v38
    %v181 = vunpack.c.l.b16 %v39
    %v182 = vunpack.c.l.b16 %v40
    %v183 = vunpack.c.l.b16 %v41
    %v184 = vunpack.c.l.b16 %v42
    %v185 = vunpack.c.l.b16 %v43
    %v186 = vunpack.c.l.b16 %v44
    %v187 = vunpack.c.l.b16 %v45
    %v188 = vunpack.c.l.b16 %v46
    %v189 = vunpack.c.l.b16 %v47
    %v190 = vunpack.c.l.b16 %v48
    %v191 = vunpack.c.l.b16 %v49
    %v192 = vunpack.c.l.b16 %v50
    %v193 = vunpack.c.l.b16 %v51
    %v194 = vunpack.c.l.b16 %v52
    %v195 = vunpack.c.l.b16 %v53
    %v196 = vunpack.c.l.b16 %v54
    %v197 = vunpack.c.l.b16 %v55
    %v198 = vunpack.c.l.b16 %v56
    %v199 = vunpack.c.l.b16 %v57
    %v200 = vunpack.c.l.b16 %v58
    %v201 = vunpack.c.l.b16 %v59
    %v202 = vunpack.c.l.b16 %v60
    %v203 = vunpack.c.l.b16 %v61
    %v204 = vunpack.c.l.b16 %v62
    %v205 = vunpack.c.l.b16 %v63
    %v206 = vunpack.c.l.b16 %v64
    %v207 = vunpack.c.l.b16 %v65
    %v208 = vunpack.c.l.b16 %v66
    %v209 = vunpack.c.l.b16 %v67
    %v210 = vunpack.c.l.b16 %v68
    %v211 = vunpack.c.l.b16 %v69
    %v212 = vunpack.c.l.b16 %v70
    %v213 = vunpack.c.l.b16 %v71
    %v214 = vunpack.c.l.b16 %v72
    %v215 = vunpack.c.l.b16 %v73
    %v216 = vunpack.c.l.b16 %v74
    %v217 = vunpack.c.l.b16 %v75
    %v218 = vunpack.c.l.b16 %v76
    %v219 = vunpack.c.l.b16 %v77
    %v220 = vunpack.c.l.b16 %v78
    %v221 = vunpack.c.l.b16 %v79
    %v222 = vunpack.c.l.b16 %v80
    %v223 = vunpack.c.l.b16 %v81
    %v224 = vunpack.c.l.b16 %v82
    %v225 = vunpack.c.l.b16 %v83
    %v226 = vunpack.c.l.b16 %v84
    %v227 = vunpack.c.l.b16 %v85
    %v228 = vunpack.c.l.b16 %v86
    %v229 = vunpack.c.l.b16 %v87
    %v230 = vunpack.c.l.b16 %v88
    %v231 = vunpack.c.l.b16 %v89
    %v232 = vunpack.c.l.b16 %v90
    %v233 = vunpack.c.l.b16 %v91
    %v234 = vunpack.c.l.b16 %v92
    %v235 = vpack.c.b16 %v172, %v171
    %v236 = vpack.c.b16 %v174, %v173
    %v237 = vpack.c.b16 %v176, %v175
    %v238 = vpack.c.b16 %v178, %v177
    %v239 = vpack.c.b16 %v180, %v179
    %v240 = vpack.c.b16 %v182, %v181
    %v241 = vpack.c.b16 %v184, %v183
    %v242 = vpack.c.b16 %v186, %v185
    %v243 = vpack.c.b16 %v188, %v187
    %v244 = vpack.c.b16 %v190, %v189
    %v245 = vpack.c.b16 %v192, %v191
    %v246 = vpack.c.b16 %v194, %v193
    %v247 = vpack.c.b16 %v196, %v195
    %v248 = vpack.c.b16 %v198, %v197
    %v249 = vpack.c.b16 %v200, %v199
    %v250 = vpack.c.b16 %v202, %v201
    %v251 = vpack.c.b16 %v204, %v203
    %v252 = vpack.c.b16 %v206, %v205
    %v253 = vpack.c.b16 %v208, %v207
    %v254 = vpack.c.b16 %v210, %v209
    %v255 = vpack.c.b16 %v212, %v211
    %v256 = vpack.c.b16 %v214, %v213
    %v257 = vpack.c.b16 %v216, %v215
    %v258 = vpack.c.b16 %v218, %v217
    %v259 = vpack.c.b16 %v220, %v219
    %v260 = vpack.c.b16 %v222, %v221
    %v261 = vpack.c.b16 %v224, %v223
    %v262 = vpack.c.b16 %v226, %v225
    %v263 = vpack.c.b16 %v228, %v227
    %v264 = vpack.c.b16 %v230, %v229
    %v265 = vpack.c.b16 %v232, %v231
    %v266 = vpack.c.b16 %v234, %v233
    %299 = vmatpush.bf16.msra.mxu0 %v242
    %300 = vmatpush.bf16.msra.mxu0 %v241
    %301 = vmatpush.bf16.msra.mxu0 %v240
    %302 = vmatpush.bf16.msra.mxu0 %v239
    %303 = vmatpush.bf16.msra.mxu0 %v238
    %304 = vmatpush.bf16.msra.mxu0 %v237
    %305 = vmatpush.bf16.msra.mxu0 %v236
    %306 = vmatpush.bf16.msra.mxu0 %v235
    %307 = vmatmul.bf16.gmra.mxu0 %v99
    %v308 = vpop.f32.mrf.mxu0
    %v309 = vadd.f32 %v95, %v308
    %v310 = vpop.f32.mrf.mxu0
    %311 = vdwg.mxu0
    %312 = vmatpush.bf16.msra.mxu0 %v250
    %313 = vmatpush.bf16.msra.mxu0 %v249
    %314 = vmatpush.bf16.msra.mxu0 %v248
    %315 = vmatpush.bf16.msra.mxu0 %v247
    %316 = vmatpush.bf16.msra.mxu0 %v246
    %317 = vmatpush.bf16.msra.mxu0 %v245
    %318 = vmatpush.bf16.msra.mxu0 %v244
    %319 = vmatpush.bf16.msra.mxu0 %v243
    %320 = vmatmul.bf16.gmra.mxu0 %v100
    %v321 = vpop.f32.mrf.mxu0
    %v322 = vadd.f32 %v309, %v321
    %v323 = vpop.f32.mrf.mxu0
    %324 = vdwg.mxu0
    %325 = vmatpush.bf16.msra.mxu0 %v258
    %326 = vmatpush.bf16.msra.mxu0 %v257
    %327 = vmatpush.bf16.msra.mxu0 %v256
    %328 = vmatpush.bf16.msra.mxu0 %v255
    %329 = vmatpush.bf16.msra.mxu0 %v254
    %330 = vmatpush.bf16.msra.mxu0 %v253
    %331 = vmatpush.bf16.msra.mxu0 %v252
    %332 = vmatpush.bf16.msra.mxu0 %v251
    %333 = vmatmul.bf16.gmra.mxu0 %v101
    %v334 = vpop.f32.mrf.mxu0
    %v335 = vadd.f32 %v322, %v334
    %v336 = vpop.f32.mrf.mxu0
    %337 = vdwg.mxu0
    %338 = vmatpush.bf16.msra.mxu0 %v266
    %339 = vmatpush.bf16.msra.mxu0 %v265
    %340 = vmatpush.bf16.msra.mxu0 %v264
    %341 = vmatpush.bf16.msra.mxu0 %v263
    %342 = vmatpush.bf16.msra.mxu0 %v262
    %343 = vmatpush.bf16.msra.mxu0 %v261
    %344 = vmatpush.bf16.msra.mxu0 %v260
    %345 = vmatpush.bf16.msra.mxu0 %v259
    %346 = vmatmul.bf16.gmra.mxu0 %v102
    %v347 = vpop.f32.mrf.mxu0
    %v348 = vadd.f32 %v335, %v347
    %v349 = vpop.f32.mrf.mxu0
    %350 = vdwg.mxu0
    %v351 = vmax.f32 %v348, 0.0
    %v352 = vpack.c.bf16 %v351, %v351
    %v353 = vld [vmem:[%s3] sm:$0xf]
    %v354 = vld [vmem:[%s3 + $0x4] sm:$0xf]
    %v355 = vld [vmem:[%s3 + $0x8] sm:$0xf]
    %v356 = vld [vmem:[%s3 + $0xc] sm:$0xf]
    %v357 = vld [vmem:[%s3 + $0x10] sm:$0xf]
    %v358 = vld [vmem:[%s3 + $0x14] sm:$0xf]
    %v359 = vld [vmem:[%s3 + $0x18] sm:$0xf]
    %v360 = vld [vmem:[%s3 + $0x1c] sm:$0xf]
    %v361 = vld [vmem:[%s3 + $0x20] sm:$0xf]
    %v362 = vld [vmem:[%s3 + $0x24] sm:$0xf]
    %v363 = vld [vmem:[%s3 + $0x28] sm:$0xf]
    %v364 = vld [vmem:[%s3 + $0x2c] sm:$0xf]
    %v365 = vld [vmem:[%s3 + $0x30] sm:$0xf]
    %v366 = vld [vmem:[%s3 + $0x34] sm:$0xf]
    %v367 = vld [vmem:[%s3 + $0x38] sm:$0xf]
    %v368 = vld [vmem:[%s4] sm:$0x1]
    %v370 = vperm.slane %v368, 0
    %v387 = vunpack.c.l.b16 %v353
    %v388 = vunpack.c.l.b16 %v354
    %v389 = vunpack.c.l.b16 %v355
    %v390 = vunpack.c.l.b16 %v356
    %v391 = vunpack.c.l.b16 %v357
    %v392 = vunpack.c.l.b16 %v358
    %v393 = vunpack.c.l.b16 %v359
    %v394 = vunpack.c.l.b16 %v360
    %v395 = vunpack.c.l.b16 %v361
    %v396 = vunpack.c.l.b16 %v362
    %v397 = vunpack.c.l.b16 %v363
    %v398 = vunpack.c.l.b16 %v364
    %v399 = vunpack.c.l.b16 %v365
    %v400 = vunpack.c.l.b16 %v366
    %v401 = vunpack.c.l.b16 %v367
    %v402 = vpack.c.b16 %v388, %v387
    %v403 = vpack.c.b16 %v390, %v389
    %v404 = vpack.c.b16 %v392, %v391
    %v405 = vpack.c.b16 %v394, %v393
    %v406 = vpack.c.b16 %v396, %v395
    %v407 = vpack.c.b16 %v398, %v397
    %v408 = vpack.c.b16 %v400, %v399
    %v409 = vpack.c.b16 %v401, %v401
    %vm417 = vcmask 982016
    %v419 = vsel %vm417, %v352, 0
    %vm421 = vcmask 1043456
    %v423 = vsel %vm421, %v409, 0
    %425 = vmatpush.bf16.msra.mxu0 %v423
    %426 = vmatpush.bf16.msra.mxu0 %v408
    %427 = vmatpush.bf16.msra.mxu0 %v407
    %428 = vmatpush.bf16.msra.mxu0 %v406
    %429 = vmatpush.bf16.msra.mxu0 %v405
    %430 = vmatpush.bf16.msra.mxu0 %v404
    %431 = vmatpush.bf16.msra.mxu0 %v403
    %432 = vmatpush.bf16.msra.mxu0 %v402
    %433 = vmatmul.bf16.gmra.mxu0 %v419
    %v434 = vpop.f32.mrf.mxu0
    %v435 = vadd.f32 %v370, %v434
    %v436 = vpop.f32.mrf.mxu0
    %437 = vdwg.mxu0
    %v438 = vmax.f32 %v435, 0.0
    %v439 = vpack.c.bf16 %v438, %v438
    %v440 = vld [vmem:[%s5] sm:$0xf]
    %v441 = vld [vmem:[%s5 + $0x4] sm:$0xf]
    %v442 = vld [vmem:[%s5 + $0x8] sm:$0xf]
    %v443 = vld [vmem:[%s5 + $0xc] sm:$0xf]
    %v444 = vld [vmem:[%s5 + $0x10] sm:$0xf]
    %v445 = vld [vmem:[%s5 + $0x14] sm:$0xf]
    %v446 = vld [vmem:[%s5 + $0x18] sm:$0xf]
    %v447 = vld [vmem:[%s5 + $0x1c] sm:$0xf]
    %v448 = vld [vmem:[%s5 + $0x20] sm:$0xf]
    %v449 = vld [vmem:[%s5 + $0x24] sm:$0xf]
    %v450 = vld [vmem:[%s5 + $0x28] sm:$0x3]
    %v451 = vld [vmem:[%s6] sm:$0x1]
    %v453 = vperm.slane %v451, 0
    %v466 = vunpack.c.l.b16 %v440
    %v467 = vunpack.c.l.b16 %v441
    %v468 = vunpack.c.l.b16 %v442
    %v469 = vunpack.c.l.b16 %v443
    %v470 = vunpack.c.l.b16 %v444
    %v471 = vunpack.c.l.b16 %v445
    %v472 = vunpack.c.l.b16 %v446
    %v473 = vunpack.c.l.b16 %v447
    %v474 = vunpack.c.l.b16 %v448
    %v475 = vunpack.c.l.b16 %v449
    %v476 = vunpack.c.l.b16 %v450
    %v477 = vpack.c.b16 %v467, %v466
    %v478 = vpack.c.b16 %v469, %v468
    %v479 = vpack.c.b16 %v471, %v470
    %v480 = vpack.c.b16 %v473, %v472
    %v481 = vpack.c.b16 %v475, %v474
    %v482 = vpack.c.b16 %v476, %v476
    %vm488 = vcmask 687104
    %v490 = vsel %vm488, %v439, 0
    %vm492 = vcmask 1041408
    %v494 = vsel %vm492, %v482, 0
    %496 = vmatpush.bf16.msra.mxu0 0
    %497 = vmatpush.bf16.msra.mxu0 0
    %498 = vmatpush.bf16.msra.mxu0 %v494
    %499 = vmatpush.bf16.msra.mxu0 %v481
    %500 = vmatpush.bf16.msra.mxu0 %v480
    %501 = vmatpush.bf16.msra.mxu0 %v479
    %502 = vmatpush.bf16.msra.mxu0 %v478
    %503 = vmatpush.bf16.msra.mxu0 %v477
    %504 = vmatmul.bf16.gmra.mxu0 %v490
    %v505 = vpop.f32.mrf.mxu0
    %v506 = vadd.f32 %v453, %v505
    %v507 = vpop.f32.mrf.mxu0
    %508 = vdwg.mxu0
    %vm509 = vcmask 74752
    %510 = vst.msk [vmem:[#allocation2] sm:$0x3] %vm509, %v506
    // Predicated region
    $region30: #{convnet_forward.5} parent=1 // pred_check
      _
    $region31: #{convnet_forward.5} parent=1 // pred_check_branch
      %512 = sbr.rel (0) target = $region33
    $region32: #{convnet_forward.5} parent=1 // pred_region
      %514 = vsyncadd [#allocation3], 0
      %s516 = sshll.u32 [#allocation2], 4
      %s517 = int_to_ptr.vmem [resolvable:$true] %s516
      %s518 = sshll.u32 %s7, 4
      %s519 = int_to_ptr.hbm [resolvable:$true] %s518
      %521 = dma.vmem_to_hbm [thread:$0]  %s517, 32, %s519, [#allocation3]
    $region33: #{convnet_forward.5} parent=1 // pred_fallthru
      _
    // Predicated region
    $region34: #{convnet_forward.5} parent=1 // pred_check
      _
    $region35: #{convnet_forward.5} parent=1 // pred_check_branch
      %523 = sbr.rel (0) target = $region37
    $region36: #{convnet_forward.5} parent=1 // pred_region
      %525 = dma.done [#allocation3], 32
    $region37: #{convnet_forward.5} parent=1 // pred_fallthru
      _
    %526 = vsyncpa [#allocation3], 1

</llo_original>
